<compile_context>
chip_gen: v7x
topology: tpu7x:2x2x1
jax: 0.10.0
libtpu: 0.0.40
codegen_flags: <defaults>
</compile_context>

<pallas_src>
import functools
import math

import jax
import jax.numpy as jnp
import numpy as np
from jax.experimental import pallas as pl
from jax.experimental.pallas import tpu as pltpu

EPS = 1e-5


def _bn_relu_conv_kernel(x_ref, st_ref, w_ref, o_ref, *rest,
                         pads, emit_stats, use_acc):
  """One (j, k) grid step of BN(folded) -> ReLU -> KHxKW stride-1 conv.

  Grid: (Cout // tn, Cin // tc)   (j outer, k = cin reduction, innermost).
  The whole batch is folded into the matmul M dimension.

  x_ref:     (N, Ho, Wo, tc)    bf16  input tile (only read when j == 0)
  st_ref:    (2, tc)            f32   row 0 = scale, row 1 = shift
  w_ref:     (KH, KW, tc, tn)   bf16  conv weight tile
  o_ref:     (N, Ho, Wo, tn)          output block (resident across k)
  stats_ref: (2, tn)            f32   [emit_stats] per-channel sum / sum-sq
  pad_ref:   (nk*N, Hp, Wp, tc) bf16  cached zero-padded activations (all k)
  acc_ref:   (N*Ho*Wo, tn)      f32   [use_acc] accumulator across k
  """
  rest = list(rest)
  stats_ref = rest.pop(0) if emit_stats else None
  pad_ref = rest.pop(0)
  acc_ref = rest.pop(0) if use_acc else None

  j = pl.program_id(0)
  k = pl.program_id(1)
  nk = pl.num_programs(1)

  KH, KW, tc, tn = w_ref.shape
  N, Ho, Wo, _ = o_ref.shape
  (pad_t, pad_l), (pad_b, pad_r) = pads
  _, Hp, Wp, _ = pad_ref.shape
  rows = pl.ds(k * N, N)          # this cin tile's slab of the pad cache

  # ---- build the padded bf16 activation cache: only during the j == 0 sweep.
  @pl.when(j == 0)
  def _build_cache():
    scale = st_ref[0:1, :].reshape(1, 1, 1, tc)
    shift = st_ref[1:2, :].reshape(1, 1, 1, tc)
    act = jnp.maximum(x_ref[...].astype(jnp.float32) * scale + shift, 0.0)
    zdt = pad_ref.dtype
    # Zero only the 1-pixel border; the interior is fully overwritten below.
    if pad_t:
      pad_ref[rows, 0:pad_t, :, :] = jnp.zeros((N, pad_t, Wp, tc), zdt)
    if pad_b:
      pad_ref[rows, Hp - pad_b:Hp, :, :] = jnp.zeros((N, pad_b, Wp, tc), zdt)
    if pad_l:
      pad_ref[rows, :, 0:pad_l, :] = jnp.zeros((N, Hp, pad_l, tc), zdt)
    if pad_r:
      pad_ref[rows, :, Wp - pad_r:Wp, :] = jnp.zeros((N, Hp, pad_r, tc), zdt)
    pad_ref[rows, pad_t:pad_t + Ho, pad_l:pad_l + Wo, :] = act.astype(zdt)

  # ---- KH*KW MXU matmuls (contraction K = tc each), f32 accumulation.
  contrib = jnp.zeros((N * Ho * Wo, tn), jnp.float32)
  for kh in range(KH):
    for kw in range(KW):
      patch = pad_ref[rows, kh:kh + Ho, kw:kw + Wo, :]
      contrib += jnp.dot(patch.reshape(N * Ho * Wo, tc), w_ref[kh, kw],
                         preferred_element_type=jnp.float32)

  # ---- accumulate across cin tiles (k innermost; output index fixed over k).
  if use_acc:                                   # bf16 output: f32 scratch acc
    @pl.when(k == 0)
    def _():
      acc_ref[...] = contrib

    @pl.when(k != 0)
    def _():
      acc_ref[...] += contrib

    @pl.when(k == nk - 1)
    def _():
      o_ref[...] = acc_ref[...].reshape(N, Ho, Wo, tn).astype(o_ref.dtype)
  else:                                         # f32 output: resident block
    c4 = contrib.reshape(N, Ho, Wo, tn)

    @pl.when(k == 0)
    def _():
      o_ref[...] = c4

    @pl.when(k != 0)
    def _():
      o_ref[...] += c4

  # ---- fused per-channel batch statistics of the (f32) conv output.
  if emit_stats:
    @pl.when(k == nk - 1)
    def _():
      y = (acc_ref[...] if use_acc
           else o_ref[...].astype(jnp.float32).reshape(N * Ho * Wo, tn))
      s = jnp.sum(y, axis=0, keepdims=True)
      sq = jnp.sum(y * y, axis=0, keepdims=True)
      stats_ref[...] = jnp.concatenate([s, sq], axis=0)


def _bn_relu_conv(x, st, w, pads, *, out_dtype=jnp.float32, emit_stats=False,
                  cout_tile=None, cin_tile=None,
                  vmem_limit_bytes=48 * 1024 * 1024):
  """x: (N, Ho, Wo, Cin) NHWC (bf16); st: (2, Cin) f32; w: (KH, KW, Cin, Cout) bf16.

  Returns conv(relu(x * st[0] + st[1])) with stride 1 and the given asymmetric
  zero padding, shape (N, Ho, Wo, Cout) in `out_dtype`.  If emit_stats, also
  returns (2, Cout) f32 per-channel [sum, sum-of-squares] of the f32 output.
  """
  N, Ho, Wo, Cin = x.shape
  KH, KW, _, Cout = w.shape
  (pad_t, pad_l), (pad_b, pad_r) = pads
  assert pad_t + pad_b == KH - 1 and pad_l + pad_r == KW - 1

  tc = cin_tile or Cin        # production: multiple of 128 (256 on v6e/v7x)
  tn = cout_tile or Cout      # production: multiple of 128 (lane-dense out)
  assert Cin % tc == 0 and Cout % tn == 0
  nk, nj = Cin // tc, Cout // tn
  use_acc = (jnp.dtype(out_dtype) != jnp.dtype(jnp.float32))

  # After the j == 0 sweep, pin x / scale-shift to their last block index so
  # Pallas skips their re-DMA (they are only read when j == 0; the activations
  # are served from the VMEM pad cache for j > 0).
  def _pin(j, k):
    return jnp.minimum(k + j * nk, nk - 1)

  in_specs = [
      pl.BlockSpec((N, Ho, Wo, tc), lambda j, k: (0, 0, 0, _pin(j, k))),
      pl.BlockSpec((2, tc), lambda j, k: (0, _pin(j, k))),
      pl.BlockSpec((KH, KW, tc, tn), lambda j, k: (0, 0, k, j)),
  ]
  out_shape = jax.ShapeDtypeStruct((N, Ho, Wo, Cout), out_dtype)
  out_specs = pl.BlockSpec((N, Ho, Wo, tn), lambda j, k: (0, 0, 0, j))
  if emit_stats:
    out_shape = (out_shape, jax.ShapeDtypeStruct((2, Cout), jnp.float32))
    out_specs = (out_specs, pl.BlockSpec((2, tn), lambda j, k: (0, j)))

  scratch_shapes = [
      # bf16 padded-activation cache for ALL cin tiles (reused across j).
      # TODO(synk): for very large N*Ho*Wo*Cin on v7x (64 MiB VMEM), add a
      # spatial grid axis instead of caching the whole padded plane.
      pltpu.VMEM((nk * N, Ho + KH - 1, Wo + KW - 1, tc), jnp.bfloat16),
  ]
  if use_acc:
    scratch_shapes.append(pltpu.VMEM((N * Ho * Wo, tn), jnp.float32))

  kernel = functools.partial(_bn_relu_conv_kernel, pads=pads,
                             emit_stats=emit_stats, use_acc=use_acc)
  return pl.pallas_call(
      kernel,
      out_shape=out_shape,
      grid_spec=pltpu.PrefetchScalarGridSpec(
          num_scalar_prefetch=0,
          grid=(nj, nk),
          in_specs=in_specs,
          out_specs=out_specs,
          scratch_shapes=scratch_shapes),
      # Both axes carry a dependence (j: pad cache built at j == 0; k: the
      # cin reduction), so both are "arbitrary".
      compiler_params=pltpu.CompilerParams(
          dimension_semantics=("arbitrary", "arbitrary"),
          vmem_limit_bytes=vmem_limit_bytes),
  )(x, st, w)


# ----------------------------- glue helpers ---------------------------------


def _fold_bn(gamma, beta, mean, var):
  """Fold BN into per-channel scale/shift: bn(x) = x * scale + shift."""
  inv = gamma * jax.lax.rsqrt(var + EPS)
  return inv.astype(jnp.float32), (beta - mean * inv).astype(jnp.float32)


def _space_to_depth(x):
  """(N, H, W, C) -> (N, H//2, W//2, 4*C); folded channel = (2*p + q)*C + c."""
  N, H, W, C = x.shape
  xf = x.reshape(N, H // 2, 2, W // 2, 2, C)
  xf = jnp.transpose(xf, (0, 1, 3, 2, 4, 5))
  return xf.reshape(N, H // 2, W // 2, 4 * C)


def _fold_weight_stride2(w):
  """(3,3,Cin,Cout) stride-2 weight -> (2,2,4*Cin,Cout) stride-1 weight.

  A stride-2 3x3 conv (pad=1) on x equals a stride-1 2x2 conv (pad 1 on
  top/left only) on the space-to-depth folded x; out-of-range taps get
  structurally-zero weights (exact result).
  """
  C, Cout = w.shape[2], w.shape[3]
  wp = jnp.pad(w, ((1, 0), (1, 0), (0, 0), (0, 0)))        # (4, 4, C, Cout)
  wf = wp.reshape(2, 2, 2, 2, C, Cout).transpose(0, 2, 1, 3, 4, 5)
  return wf.reshape(2, 2, 4 * C, Cout)


# ----------------------------- Bridge forward -------------------------------


def bridge_forward(x_nchw, params, *, cin_tile=None, cout_tile=None):
  """Pallas forward of Bridge.  x_nchw: (N, Cin, H, W) -> (N, Cout, H/2, W/2)."""
  g1, b1, w1, g2, b2, w2 = (params[k] for k in
                            ("g1", "b1", "w1", "g2", "b2", "w2"))
  x = jnp.transpose(x_nchw, (0, 2, 3, 1)).astype(jnp.float32)   # -> NHWC
  N, H, W, Cin = x.shape

  # ---- bn1 (train-mode batch stats, two-pass f32 for precision) ----
  # TODO(synk): bn1 statistics and the NCHW->NHWC / space-to-depth layout
  # folds stay in XLA glue; the normalize/relu/conv hot path is the kernel.
  m1 = jnp.mean(x, axis=(0, 1, 2))
  v1 = jnp.var(x, axis=(0, 1, 2))
  s1, t1 = _fold_bn(g1, b1, m1, v1)
  st1 = jnp.stack([jnp.tile(s1, 4), jnp.tile(t1, 4)])            # (2, 4*Cin)

  xf = _space_to_depth(x).astype(jnp.bfloat16)          # (N, H/2, W/2, 4*Cin)
  w1f = _fold_weight_stride2(w1).astype(jnp.bfloat16)   # (2, 2, 4*Cin, Cout)

  # ---- stage 1: bn1 -> relu -> conv1 (stride-2 folded to 2x2) + bn2 stats --
  y1, stats1 = _bn_relu_conv(
      xf, st1, w1f, pads=((1, 1), (0, 0)),               # pad top/left only
      out_dtype=jnp.bfloat16, emit_stats=True,
      cin_tile=cin_tile, cout_tile=cout_tile)

  count = N * (H // 2) * (W // 2)
  m2 = stats1[0] / count
  v2 = jnp.maximum(stats1[1] / count - m2 * m2, 0.0)
  s2, t2 = _fold_bn(g2, b2, m2, v2)
  st2 = jnp.stack([s2, t2])                              # (2, Cout)

  # ---- stage 2: bn2 -> relu -> conv2 (3x3, stride 1) ----
  y2 = _bn_relu_conv(
      y1, st2, w2.astype(jnp.bfloat16), pads=((1, 1), (1, 1)),
      out_dtype=jnp.float32, emit_stats=False,
      cin_tile=cin_tile, cout_tile=cout_tile)

  return jnp.transpose(y2, (0, 3, 1, 2))                 # -> NCHW


def ref_forward(x_nchw, params):
  """Plain-JAX f32 reference (same math) for validation."""
  g1, b1, w1, g2, b2, w2 = (params[k] for k in
                            ("g1", "b1", "w1", "g2", "b2", "w2"))
  x = jnp.transpose(x_nchw, (0, 2, 3, 1)).astype(jnp.float32)

  def bn(x, g, b):
    m = jnp.mean(x, axis=(0, 1, 2))
    v = jnp.var(x, axis=(0, 1, 2))
    return (x - m) / jnp.sqrt(v + EPS) * g + b

  def conv(x, w, stride):
    return jax.lax.conv_general_dilated(
        x, w, (stride, stride), ((1, 1), (1, 1)),
        dimension_numbers=("NHWC", "HWIO", "NHWC"))

  y = conv(jax.nn.relu(bn(x, g1, b1)), w1, 2)
  y = conv(jax.nn.relu(bn(y, g2, b2)), w2, 1)
  return jnp.transpose(y, (0, 3, 1, 2))


if __name__ == "__main__":
  # Real module defaults give in_channels = 2**(log2(64)+5) = 2048,
  # out_channels = 4096.  Same formula at small scale for this synthetic run:
  # init_in_channels=4, num_blocks=1 -> Cin=8, Cout=16.
  init_in_channels, num_blocks = 4, 1
  CIN = int(2 ** (math.log2(init_in_channels) + num_blocks))   # 8
  COUT = CIN * 2                                               # 16
  N, H, W = 2, 16, 16

  key = jax.random.PRNGKey(0)
  k1, k2, kx = jax.random.split(key, 3)

  params = {
      # BatchNorm2d defaults: weight=1, bias=0
      "g1": jnp.ones((CIN,), jnp.float32),
      "b1": jnp.zeros((CIN,), jnp.float32),
      "g2": jnp.ones((COUT,), jnp.float32),
      "b2": jnp.zeros((COUT,), jnp.float32),
      # conv weights, HWIO, kaiming-like scale, deterministic
      "w1": jax.random.normal(k1, (3, 3, CIN, COUT), jnp.float32)
            * np.sqrt(2.0 / (9 * CIN)),
      "w2": jax.random.normal(k2, (3, 3, COUT, COUT), jnp.float32)
            * np.sqrt(2.0 / (9 * COUT)),
  }

  x = jax.random.normal(kx, (N, CIN, H, W), jnp.float32)   # NCHW like PyTorch

  out = jax.block_until_ready(bridge_forward(x, params))
  assert out.shape == (N, COUT, H // 2, W // 2), out.shape

  ref = jax.block_until_ready(ref_forward(x, params))
  # bf16 activations/weights on the MXU (f32 accumulation) vs pure-f32 ref.
  np.testing.assert_allclose(np.asarray(out), np.asarray(ref),
                             rtol=5e-2, atol=5e-2)

  print("KERNEL_OK")
</pallas_src>

<mosaic_0001>
module attributes {stable_mosaic.version = 11 : i64} {
  func.func @_bn_relu_conv_kernel(%arg0: i32, %arg1: i32, %arg2: memref<2x8x8x32xbf16, #tpu.memory_space<vmem>>, %arg3: memref<2x32xf32, #tpu.memory_space<vmem>>, %arg4: memref<2x2x32x16xbf16, #tpu.memory_space<vmem>>, %arg5: memref<2x8x8x16xbf16, #tpu.memory_space<vmem>>, %arg6: memref<2x16xf32, #tpu.memory_space<vmem>>, %arg7: memref<2x9x9x32xbf16, #tpu.memory_space<vmem>>, %arg8: memref<128x16xf32, #tpu.memory_space<vmem>>) attributes {dimension_semantics = [#tpu.dimension_semantics<arbitrary>, #tpu.dimension_semantics<arbitrary>], iteration_bounds = array<i64: 1, 1>, scalar_prefetch = 0 : i64, scratch_operands = 2 : i64, tpu.core_type = #tpu.core_type<tc>, window_params = [{transform_indices = @transform_0, window_bounds = array<i64: 2, 8, 8, 32>}, {transform_indices = @transform_1, window_bounds = array<i64: 2, 32>}, {transform_indices = @transform_2, window_bounds = array<i64: 2, 2, 32, 16>}, {transform_indices = @transform_3, window_bounds = array<i64: 2, 8, 8, 16>}, {transform_indices = @transform_4, window_bounds = array<i64: 2, 16>}]} {
    %c2_i32 = arith.constant 2 : i32
    %0 = arith.muli %arg1, %c2_i32 : i32
    %c0_i32 = arith.constant 0 : i32
    %1 = arith.cmpi eq, %arg0, %c0_i32 : i32
    %2 = arith.extui %1 : i1 to i32
    %c0_i32_0 = arith.constant 0 : i32
    %3 = arith.cmpi ne, %2, %c0_i32_0 : i32
    scf.if %3 {
      %c0_39 = arith.constant 0 : index
      %c0_40 = arith.constant 0 : index
      %45 = vector.load %arg3[%c0_39, %c0_40] : memref<2x32xf32, #tpu.memory_space<vmem>>, vector<1x32xf32>
      %46 = vector.shape_cast %45 : vector<1x32xf32> to vector<1x1x1x32xf32>
      %c1_41 = arith.constant 1 : index
      %c0_42 = arith.constant 0 : index
      %47 = vector.load %arg3[%c1_41, %c0_42] : memref<2x32xf32, #tpu.memory_space<vmem>>, vector<1x32xf32>
      %48 = vector.shape_cast %47 : vector<1x32xf32> to vector<1x1x1x32xf32>
      %c0_43 = arith.constant 0 : index
      %c0_44 = arith.constant 0 : index
      %c0_45 = arith.constant 0 : index
      %c0_46 = arith.constant 0 : index
      %49 = vector.load %arg2[%c0_43, %c0_44, %c0_45, %c0_46] : memref<2x8x8x32xbf16, #tpu.memory_space<vmem>>, vector<2x8x8x32xbf16>
      %50 = arith.extf %49 : vector<2x8x8x32xbf16> to vector<2x8x8x32xf32>
      %51 = vector.broadcast %46 : vector<1x1x1x32xf32> to vector<2x8x8x32xf32>
      %52 = arith.mulf %50, %51 : vector<2x8x8x32xf32>
      %53 = vector.broadcast %48 : vector<1x1x1x32xf32> to vector<2x8x8x32xf32>
      %54 = arith.addf %52, %53 : vector<2x8x8x32xf32>
      %cst_47 = arith.constant 0.000000e+00 : f32
      %55 = vector.broadcast %cst_47 : f32 to vector<2x8x8x32xf32>
      %56 = arith.maximumf %54, %55 : vector<2x8x8x32xf32>
      %cst_48 = arith.constant 0.000000e+00 : bf16
      %57 = vector.broadcast %cst_48 : bf16 to vector<2x1x9x32xbf16>
      %58 = arith.index_cast %0 : i32 to index
      %c0_49 = arith.constant 0 : index
      %c0_50 = arith.constant 0 : index
      %c0_51 = arith.constant 0 : index
      %59 = vector.load %arg7[%58, %c0_49, %c0_50, %c0_51] : memref<2x9x9x32xbf16, #tpu.memory_space<vmem>>, vector<2x1x9x32xbf16>
      tpu.vector_store %arg7[%58, %c0_49, %c0_50, %c0_51], %57 {strides = array<i32>} : memref<2x9x9x32xbf16, #tpu.memory_space<vmem>>, vector<2x1x9x32xbf16>,
      %cst_52 = arith.constant 0.000000e+00 : bf16
      %60 = vector.broadcast %cst_52 : bf16 to vector<2x9x1x32xbf16>
      %61 = arith.index_cast %0 : i32 to index
      %c0_53 = arith.constant 0 : index
      %c0_54 = arith.constant 0 : index
      %c0_55 = arith.constant 0 : index
      %62 = vector.load %arg7[%61, %c0_53, %c0_54, %c0_55] : memref<2x9x9x32xbf16, #tpu.memory_space<vmem>>, vector<2x9x1x32xbf16>
      tpu.vector_store %arg7[%61, %c0_53, %c0_54, %c0_55], %60 {strides = array<i32>} : memref<2x9x9x32xbf16, #tpu.memory_space<vmem>>, vector<2x9x1x32xbf16>,
      %63 = arith.truncf %56 : vector<2x8x8x32xf32> to vector<2x8x8x32xbf16>
      %64 = arith.index_cast %0 : i32 to index
      %c1_56 = arith.constant 1 : index
      %c1_57 = arith.constant 1 : index
      %c0_58 = arith.constant 0 : index
      %65 = vector.load %arg7[%64, %c1_56, %c1_57, %c0_58] : memref<2x9x9x32xbf16, #tpu.memory_space<vmem>>, vector<2x8x8x32xbf16>
      tpu.vector_store %arg7[%64, %c1_56, %c1_57, %c0_58], %63 {strides = array<i32>} : memref<2x9x9x32xbf16, #tpu.memory_space<vmem>>, vector<2x8x8x32xbf16>,
    } else {
    }
    %cst = arith.constant 0.000000e+00 : f32
    %4 = vector.broadcast %cst : f32 to vector<128x16xf32>
    %5 = arith.index_cast %0 : i32 to index
    %c0 = arith.constant 0 : index
    %c0_1 = arith.constant 0 : index
    %c0_2 = arith.constant 0 : index
    %6 = vector.load %arg7[%5, %c0, %c0_1, %c0_2] : memref<2x9x9x32xbf16, #tpu.memory_space<vmem>>, vector<2x8x8x32xbf16>
    %7 = vector.shape_cast %6 : vector<2x8x8x32xbf16> to vector<128x32xbf16>
    %c0_3 = arith.constant 0 : index
    %c0_4 = arith.constant 0 : index
    %c0_5 = arith.constant 0 : index
    %c0_6 = arith.constant 0 : index
    %8 = vector.load %arg4[%c0_3, %c0_4, %c0_5, %c0_6] : memref<2x2x32x16xbf16, #tpu.memory_space<vmem>>, vector<1x1x32x16xbf16>
    %9 = vector.shape_cast %8 : vector<1x1x32x16xbf16> to vector<32x16xbf16>
    %cst_7 = arith.constant dense<0.000000e+00> : vector<128x16xf32>
    %10 = tpu.matmul %7, %9, %cst_7 {dimension_numbers = #tpu.dot_dimension_numbers<[1], [0], [0], [1], [0, 0, 1, 1], [], []>} : vector<128x32xbf16>, vector<32x16xbf16>, vector<128x16xf32> -> vector<128x16xf32>
    %11 = arith.addf %4, %10 : vector<128x16xf32>
    %12 = arith.index_cast %0 : i32 to index
    %c0_8 = arith.constant 0 : index
    %c1 = arith.constant 1 : index
    %c0_9 = arith.constant 0 : index
    %13 = vector.load %arg7[%12, %c0_8, %c1, %c0_9] : memref<2x9x9x32xbf16, #tpu.memory_space<vmem>>, vector<2x8x8x32xbf16>
    %14 = vector.shape_cast %13 : vector<2x8x8x32xbf16> to vector<128x32xbf16>
    %c0_10 = arith.constant 0 : index
    %c1_11 = arith.constant 1 : index
    %c0_12 = arith.constant 0 : index
    %c0_13 = arith.constant 0 : index
    %15 = vector.load %arg4[%c0_10, %c1_11, %c0_12, %c0_13] : memref<2x2x32x16xbf16, #tpu.memory_space<vmem>>, vector<1x1x32x16xbf16>
    %16 = vector.shape_cast %15 : vector<1x1x32x16xbf16> to vector<32x16xbf16>
    %cst_14 = arith.constant dense<0.000000e+00> : vector<128x16xf32>
    %17 = tpu.matmul %14, %16, %cst_14 {dimension_numbers = #tpu.dot_dimension_numbers<[1], [0], [0], [1], [0, 0, 1, 1], [], []>} : vector<128x32xbf16>, vector<32x16xbf16>, vector<128x16xf32> -> vector<128x16xf32>
    %18 = arith.addf %11, %17 : vector<128x16xf32>
    %19 = arith.index_cast %0 : i32 to index
    %c1_15 = arith.constant 1 : index
    %c0_16 = arith.constant 0 : index
    %c0_17 = arith.constant 0 : index
    %20 = vector.load %arg7[%19, %c1_15, %c0_16, %c0_17] : memref<2x9x9x32xbf16, #tpu.memory_space<vmem>>, vector<2x8x8x32xbf16>
    %21 = vector.shape_cast %20 : vector<2x8x8x32xbf16> to vector<128x32xbf16>
    %c1_18 = arith.constant 1 : index
    %c0_19 = arith.constant 0 : index
    %c0_20 = arith.constant 0 : index
    %c0_21 = arith.constant 0 : index
    %22 = vector.load %arg4[%c1_18, %c0_19, %c0_20, %c0_21] : memref<2x2x32x16xbf16, #tpu.memory_space<vmem>>, vector<1x1x32x16xbf16>
    %23 = vector.shape_cast %22 : vector<1x1x32x16xbf16> to vector<32x16xbf16>
    %cst_22 = arith.constant dense<0.000000e+00> : vector<128x16xf32>
    %24 = tpu.matmul %21, %23, %cst_22 {dimension_numbers = #tpu.dot_dimension_numbers<[1], [0], [0], [1], [0, 0, 1, 1], [], []>} : vector<128x32xbf16>, vector<32x16xbf16>, vector<128x16xf32> -> vector<128x16xf32>
    %25 = arith.addf %18, %24 : vector<128x16xf32>
    %26 = arith.index_cast %0 : i32 to index
    %c1_23 = arith.constant 1 : index
    %c1_24 = arith.constant 1 : index
    %c0_25 = arith.constant 0 : index
    %27 = vector.load %arg7[%26, %c1_23, %c1_24, %c0_25] : memref<2x9x9x32xbf16, #tpu.memory_space<vmem>>, vector<2x8x8x32xbf16>
    %28 = vector.shape_cast %27 : vector<2x8x8x32xbf16> to vector<128x32xbf16>
    %c1_26 = arith.constant 1 : index
    %c1_27 = arith.constant 1 : index
    %c0_28 = arith.constant 0 : index
    %c0_29 = arith.constant 0 : index
    %29 = vector.load %arg4[%c1_26, %c1_27, %c0_28, %c0_29] : memref<2x2x32x16xbf16, #tpu.memory_space<vmem>>, vector<1x1x32x16xbf16>
    %30 = vector.shape_cast %29 : vector<1x1x32x16xbf16> to vector<32x16xbf16>
    %cst_30 = arith.constant dense<0.000000e+00> : vector<128x16xf32>
    %31 = tpu.matmul %28, %30, %cst_30 {dimension_numbers = #tpu.dot_dimension_numbers<[1], [0], [0], [1], [0, 0, 1, 1], [], []>} : vector<128x32xbf16>, vector<32x16xbf16>, vector<128x16xf32> -> vector<128x16xf32>
    %32 = arith.addf %25, %31 : vector<128x16xf32>
    %c0_i32_31 = arith.constant 0 : i32
    %33 = arith.cmpi eq, %arg1, %c0_i32_31 : i32
    %34 = arith.extui %33 : i1 to i32
    %c0_i32_32 = arith.constant 0 : i32
    %35 = arith.cmpi ne, %34, %c0_i32_32 : i32
    scf.if %35 {
      %c0_39 = arith.constant 0 : index
      %c0_40 = arith.constant 0 : index
      %45 = vector.load %arg8[%c0_39, %c0_40] : memref<128x16xf32, #tpu.memory_space<vmem>>, vector<128x16xf32>
      tpu.vector_store %arg8[%c0_39, %c0_40], %32 {strides = array<i32>} : memref<128x16xf32, #tpu.memory_space<vmem>>, vector<128x16xf32>,
    } else {
    }
    %c0_i32_33 = arith.constant 0 : i32
    %36 = arith.cmpi ne, %arg1, %c0_i32_33 : i32
    %37 = arith.extui %36 : i1 to i32
    %c0_i32_34 = arith.constant 0 : i32
    %38 = arith.cmpi ne, %37, %c0_i32_34 : i32
    scf.if %38 {
      %c0_39 = arith.constant 0 : index
      %c0_40 = arith.constant 0 : index
      %45 = vector.load %arg8[%c0_39, %c0_40] : memref<128x16xf32, #tpu.memory_space<vmem>>, vector<128x16xf32>
      %46 = arith.addf %45, %32 : vector<128x16xf32>
      %c0_41 = arith.constant 0 : index
      %c0_42 = arith.constant 0 : index
      %47 = vector.load %arg8[%c0_41, %c0_42] : memref<128x16xf32, #tpu.memory_space<vmem>>, vector<128x16xf32>
      tpu.vector_store %arg8[%c0_41, %c0_42], %46 {strides = array<i32>} : memref<128x16xf32, #tpu.memory_space<vmem>>, vector<128x16xf32>,
    } else {
    }
    %c0_i32_35 = arith.constant 0 : i32
    %39 = arith.cmpi eq, %arg1, %c0_i32_35 : i32
    %40 = arith.extui %39 : i1 to i32
    %c0_i32_36 = arith.constant 0 : i32
    %41 = arith.cmpi ne, %40, %c0_i32_36 : i32
    scf.if %41 {
      %c0_39 = arith.constant 0 : index
      %c0_40 = arith.constant 0 : index
      %45 = vector.load %arg8[%c0_39, %c0_40] : memref<128x16xf32, #tpu.memory_space<vmem>>, vector<128x16xf32>
      %46 = vector.shape_cast %45 : vector<128x16xf32> to vector<2x8x8x16xf32>
      %47 = arith.truncf %46 : vector<2x8x8x16xf32> to vector<2x8x8x16xbf16>
      %c0_41 = arith.constant 0 : index
      %c0_42 = arith.constant 0 : index
      %c0_43 = arith.constant 0 : index
      %c0_44 = arith.constant 0 : index
      %48 = vector.load %arg5[%c0_41, %c0_42, %c0_43, %c0_44] : memref<2x8x8x16xbf16, #tpu.memory_space<vmem>>, vector<2x8x8x16xbf16>
      tpu.vector_store %arg5[%c0_41, %c0_42, %c0_43, %c0_44], %47 {strides = array<i32>} : memref<2x8x8x16xbf16, #tpu.memory_space<vmem>>, vector<2x8x8x16xbf16>,
    } else {
    }
    %c0_i32_37 = arith.constant 0 : i32
    %42 = arith.cmpi eq, %arg1, %c0_i32_37 : i32
    %43 = arith.extui %42 : i1 to i32
    %c0_i32_38 = arith.constant 0 : i32
    %44 = arith.cmpi ne, %43, %c0_i32_38 : i32
    scf.if %44 {
      %c0_39 = arith.constant 0 : index
      %c0_40 = arith.constant 0 : index
      %45 = vector.load %arg8[%c0_39, %c0_40] : memref<128x16xf32, #tpu.memory_space<vmem>>, vector<128x16xf32>
      %cst_41 = arith.constant dense<0.000000e+00> : vector<16xf32>
      %46 = vector.multi_reduction <add>, %45, %cst_41 [0] : vector<128x16xf32> to vector<16xf32>
      %47 = vector.shape_cast %46 : vector<16xf32> to vector<1x16xf32>
      %48 = arith.mulf %45, %45 : vector<128x16xf32>
      %cst_42 = arith.constant dense<0.000000e+00> : vector<16xf32>
      %49 = vector.multi_reduction <add>, %48, %cst_42 [0] : vector<128x16xf32> to vector<16xf32>
      %50 = vector.shape_cast %49 : vector<16xf32> to vector<1x16xf32>
      %51 = tpu.concatenate %47, %50 in 0 : vector<1x16xf32>, vector<1x16xf32> -> vector<2x16xf32>
      %c0_43 = arith.constant 0 : index
      %c0_44 = arith.constant 0 : index
      %52 = vector.load %arg6[%c0_43, %c0_44] : memref<2x16xf32, #tpu.memory_space<vmem>>, vector<2x16xf32>
      tpu.vector_store %arg6[%c0_43, %c0_44], %51 {strides = array<i32>} : memref<2x16xf32, #tpu.memory_space<vmem>>, vector<2x16xf32>,
    } else {
    }
    return
  }
  func.func @transform_0(%arg0: i32, %arg1: i32) -> (i32, i32, i32, i32) {
    %c1_i32 = arith.constant 1 : i32
    %0 = arith.muli %arg0, %c1_i32 : i32
    %1 = arith.addi %arg1, %0 : i32
    %c0_i32 = arith.constant 0 : i32
    %2 = arith.minsi %1, %c0_i32 : i32
    %c0_i32_0 = arith.constant 0 : i32
    %c0_i32_1 = arith.constant 0 : i32
    %c0_i32_2 = arith.constant 0 : i32
    %c0_i32_3 = arith.constant 0 : i32
    return %c0_i32_0, %c0_i32_1, %c0_i32_2, %2 : i32, i32, i32, i32
  }
  func.func @transform_1(%arg0: i32, %arg1: i32) -> (i32, i32) {
    %c1_i32 = arith.constant 1 : i32
    %0 = arith.muli %arg0, %c1_i32 : i32
    %1 = arith.addi %arg1, %0 : i32
    %c0_i32 = arith.constant 0 : i32
    %2 = arith.minsi %1, %c0_i32 : i32
    %c0_i32_0 = arith.constant 0 : i32
    %c0_i32_1 = arith.constant 0 : i32
    return %c0_i32_0, %2 : i32, i32
  }
  func.func @transform_2(%arg0: i32, %arg1: i32) -> (i32, i32, i32, i32) {
    %c0_i32 = arith.constant 0 : i32
    %c0_i32_0 = arith.constant 0 : i32
    %c0_i32_1 = arith.constant 0 : i32
    return %c0_i32, %c0_i32_0, %arg1, %arg0 : i32, i32, i32, i32
  }
  func.func @transform_3(%arg0: i32, %arg1: i32) -> (i32, i32, i32, i32) {
    %c0_i32 = arith.constant 0 : i32
    %c0_i32_0 = arith.constant 0 : i32
    %c0_i32_1 = arith.constant 0 : i32
    %c0_i32_2 = arith.constant 0 : i32
    return %c0_i32, %c0_i32_0, %c0_i32_1, %arg0 : i32, i32, i32, i32
  }
  func.func @transform_4(%arg0: i32, %arg1: i32) -> (i32, i32) {
    %c0_i32 = arith.constant 0 : i32
    %c0_i32_0 = arith.constant 0 : i32
    return %c0_i32, %arg0 : i32, i32
  }
}

</mosaic_0001>

<llo_original>
// kernel: tpu_custom_call.1
$region0: #{tpu_custom_call.1}
  #allocation0 [shape = 'u32[]', space=smem, size = 0x4, offset = 0x4, fixed_abs, tag = 'smem constant byte address 0x4 - core index']
  #allocation1 [shape = 'u32[144,128]{1,0:T(1,128)}', space=vmem, size = 0x12000, scoped, tag = 'internal scratch']
  #allocation2 [shape = 'bf16[2,9,9,32]{3,2,1,0:T(8,128)(2,1)}', space=vmem, size = 0x12000, scoped, tag = 'scratch operand']
  #allocation3 [shape = 'f32[128,16]{1,0:T(8,128)}', space=vmem, size = 0x10000, scoped, tag = 'scratch operand']
  %s0 = inlined_call_operand.vmem [shape: bf16[2,8,8,32], index: 0, kind: input, shape index: {}]
  %s1 = inlined_call_operand.vmem [shape: f32[2,32], index: 1, kind: input, shape index: {}]
  %s2 = inlined_call_operand.vmem [shape: bf16[2,2,32,16], index: 2, kind: input, shape index: {}]
  %s3 = inlined_call_operand.hbm [shape: bf16[2,8,8,16], index: 3, kind: output, shape index: {0}]
  %s4 = inlined_call_operand.hbm [shape: f32[2,16], index: 4, kind: output, shape index: {1}]
  %5 = xla_tuple %s3, %s4
  %s6 = sld [smem:[#allocation0]]
  $region46: #{tpu_custom_call.1} parent=0
    _
  %s8 = ssub.s32 1, %s6
  %s9 = scalar_select 0, %s8, %s6
  $region1: #{tpu_custom_call.1} parent=0
    #allocation4 [shape = 'u8[32768]{0}', space=vmem, size = 0x8000, scoped, tag = 'output window, operand 0, single buffered']
    #allocation5 [shape = 's32[1]{0}', space=sflag, size = 0x4, scoped, tag = 'scoped memory for tpu_custom_call.1']
    #allocation6 [shape = 'u8[1024]{0}', space=vmem, size = 0x400, scoped, tag = 'output window, operand 1, single buffered']
    #allocation7 [shape = 's32[1]{0}', space=sflag, size = 0x4, scoped, tag = 'scoped memory for tpu_custom_call.1']
    %10 = vsyncpa [#allocation5], 0
    %11 = vsyncpa [#allocation7], 0
    // Predicated region
    $region2: #{tpu_custom_call.1} parent=1 // pred_check
      _
    $region3: #{tpu_custom_call.1} parent=1 // pred_check_branch
      %13 = sbr.rel (0) target = $region5
    $region4: #{tpu_custom_call.1} parent=1 // pred_region
      %s14 = sadd.s32 0, 0
      %p15 = scmp.lt.s32.totalorder %s14, 0
      %s16 = scalar_select %p15, %s14, 0
      %p17 = scmp.lt.s32.totalorder %s16, 0
      %s18 = scalar_select %p17, %s16, 0
      %s19 = smul.addr %s18, 4
      %s20 = scalar_lea.vmem %s0, %s19
      %s21 = sadd.s32 0, 0
      %p22 = scmp.lt.s32.totalorder %s21, 0
      %s23 = scalar_select %p22, %s21, 0
    $region5: #{tpu_custom_call.1} parent=1 // pred_fallthru
      _
    // Predicated region
    $region6: #{tpu_custom_call.1} parent=1 // pred_check
      _
    $region7: #{tpu_custom_call.1} parent=1 // pred_check_branch
      %25 = sbr.rel (0) target = $region9
    $region8: #{tpu_custom_call.1} parent=1 // pred_region
      %s26 = sadd.s32 0, 0
      %p27 = scmp.lt.s32.totalorder %s26, 0
      %s28 = scalar_select %p27, %s26, 0
      %p29 = scmp.lt.s32.totalorder %s28, 0
      %s30 = scalar_select %p29, %s28, 0
      %s31 = smul.addr %s30, 2
      %s32 = scalar_lea.vmem %s1, %s31
      %s33 = sadd.s32 0, 0
      %p34 = scmp.lt.s32.totalorder %s33, 0
      %s35 = scalar_select %p34, %s33, 0
    $region9: #{tpu_custom_call.1} parent=1 // pred_fallthru
      _
    // Predicated region
    $region10: #{tpu_custom_call.1} parent=1 // pred_check
      _
    $region11: #{tpu_custom_call.1} parent=1 // pred_check_branch
      %37 = sbr.rel (0) target = $region13
    $region12: #{tpu_custom_call.1} parent=1 // pred_region
      _
    $region13: #{tpu_custom_call.1} parent=1 // pred_fallthru
      _
    %s38 = sadd.s32 0, 0
    %p39 = scmp.lt.s32.totalorder %s38, 0
    %s40 = scalar_select %p39, %s38, 0
    %p41 = scmp.lt.s32.totalorder %s40, 0
    %s42 = scalar_select %p41, %s40, 0
    %s43 = smul.addr %s42, 4
    %s44 = scalar_lea.vmem %s0, %s43
    %s45 = sadd.s32 0, 0
    %p46 = scmp.lt.s32.totalorder %s45, 0
    %s47 = scalar_select %p46, %s45, 0
    %p48 = scmp.lt.s32.totalorder %s47, 0
    %s49 = scalar_select %p48, %s47, 0
    %s50 = smul.addr %s49, 2
    %s51 = scalar_lea.vmem %s1, %s50
    %s52 = sadd.s32 0, 0
    %p53 = scmp.lt.s32.totalorder %s52, 0
    %s54 = scalar_select %p53, %s52, 0
    %p55 = scmp.lt.s32.totalorder %s54, 0
    %s56 = scalar_select %p55, %s54, 0
    %s57 = smul.addr %s56, 4
    %s58 = scalar_lea.vmem %s0, %s57
    %s59 = sadd.s32 0, 0
    %p60 = scmp.lt.s32.totalorder %s59, 0
    %s61 = scalar_select %p60, %s59, 0
    %s62 = sadd.s32 0, 0
    %p63 = scmp.lt.s32.totalorder %s62, 0
    %s64 = scalar_select %p63, %s62, 0
    %p65 = scmp.lt.s32.totalorder %s64, 0
    %s66 = scalar_select %p65, %s64, 0
    %s67 = smul.addr %s66, 2
    %s68 = scalar_lea.vmem %s1, %s67
    %s69 = sadd.s32 0, 0
    %p70 = scmp.lt.s32.totalorder %s69, 0
    %s71 = scalar_select %p70, %s69, 0
    %s73 = smul.u32 0, 2
    %p74 = scmp.eq.s32.totalorder 0, 0
    // Predicated region
    $region14: #{tpu_custom_call.1} parent=1 // pred_check
      %p75 = pneg %p74
    $region15: #{tpu_custom_call.1} parent=1 // pred_check_branch
      %77 = sbr.rel (%p75) target = $region17
    $region16: #{tpu_custom_call.1} parent=1 // pred_region
      %v78 = vld [vmem:[%s68] sm:$0x1]
      %v79 = vld [vmem:[%s68 + $0x1] sm:$0x1]
      %v80 = vld [vmem:[%s58] sm:$0xf]
      %v81 = vld [vmem:[%s58 + $0x4] sm:$0xf]
      %v82 = vld [vmem:[%s58 + $0x8] sm:$0xf]
      %v83 = vld [vmem:[%s58 + $0xc] sm:$0xf]
      %v84 = vld [vmem:[%s58 + $0x10] sm:$0xf]
      %v85 = vld [vmem:[%s58 + $0x14] sm:$0xf]
      %v86 = vld [vmem:[%s58 + $0x18] sm:$0xf]
      %v87 = vld [vmem:[%s58 + $0x1c] sm:$0xf]
      %v88 = vld [vmem:[%s58 + $0x20] sm:$0xf]
      %v89 = vld [vmem:[%s58 + $0x24] sm:$0xf]
      %v90 = vld [vmem:[%s58 + $0x28] sm:$0xf]
      %v91 = vld [vmem:[%s58 + $0x2c] sm:$0xf]
      %v92 = vld [vmem:[%s58 + $0x30] sm:$0xf]
      %v93 = vld [vmem:[%s58 + $0x34] sm:$0xf]
      %v94 = vld [vmem:[%s58 + $0x38] sm:$0xf]
      %v95 = vld [vmem:[%s58 + $0x3c] sm:$0xf]
      %v96 = vunpack.c.l.bf16 %v80
      %v97 = vunpack.c.l.bf16 %v81
      %v98 = vunpack.c.l.bf16 %v82
      %v99 = vunpack.c.l.bf16 %v83
      %v100 = vunpack.c.l.bf16 %v84
      %v101 = vunpack.c.l.bf16 %v85
      %v102 = vunpack.c.l.bf16 %v86
      %v103 = vunpack.c.l.bf16 %v87
      %v104 = vunpack.c.l.bf16 %v88
      %v105 = vunpack.c.l.bf16 %v89
      %v106 = vunpack.c.l.bf16 %v90
      %v107 = vunpack.c.l.bf16 %v91
      %v108 = vunpack.c.l.bf16 %v92
      %v109 = vunpack.c.l.bf16 %v93
      %v110 = vunpack.c.l.bf16 %v94
      %v111 = vunpack.c.l.bf16 %v95
      %v112 = vlaneseq
      %v113 = vshrl.u32 %v112, 7
      %v114 = vsub.s32 0, %v113
      %v115 = vrot.slane %v78, %v114
      %v116 = vmul.f32 %v96, %v115
      %v117 = vmul.f32 %v97, %v115
      %v118 = vmul.f32 %v98, %v115
      %v119 = vmul.f32 %v99, %v115
      %v120 = vmul.f32 %v100, %v115
      %v121 = vmul.f32 %v101, %v115
      %v122 = vmul.f32 %v102, %v115
      %v123 = vmul.f32 %v103, %v115
      %v124 = vmul.f32 %v104, %v115
      %v125 = vmul.f32 %v105, %v115
      %v126 = vmul.f32 %v106, %v115
      %v127 = vmul.f32 %v107, %v115
      %v128 = vmul.f32 %v108, %v115
      %v129 = vmul.f32 %v109, %v115
      %v130 = vmul.f32 %v110, %v115
      %v131 = vmul.f32 %v111, %v115
      %v132 = vlaneseq
      %v133 = vshrl.u32 %v132, 7
      %v134 = vsub.s32 0, %v133
      %v135 = vrot.slane %v79, %v134
      %v136 = vadd.f32 %v116, %v135
      %v137 = vadd.f32 %v117, %v135
      %v138 = vadd.f32 %v118, %v135
      %v139 = vadd.f32 %v119, %v135
      %v140 = vadd.f32 %v120, %v135
      %v141 = vadd.f32 %v121, %v135
      %v142 = vadd.f32 %v122, %v135
      %v143 = vadd.f32 %v123, %v135
      %v144 = vadd.f32 %v124, %v135
      %v145 = vadd.f32 %v125, %v135
      %v146 = vadd.f32 %v126, %v135
      %v147 = vadd.f32 %v127, %v135
      %v148 = vadd.f32 %v128, %v135
      %v149 = vadd.f32 %v129, %v135
      %v150 = vadd.f32 %v130, %v135
      %v151 = vadd.f32 %v131, %v135
      %v152 = vmax.f32 %v136, 0.0
      %v153 = vmax.f32 %v137, 0.0
      %v154 = vmax.f32 %v138, 0.0
      %v155 = vmax.f32 %v139, 0.0
      %v156 = vmax.f32 %v140, 0.0
      %v157 = vmax.f32 %v141, 0.0
      %v158 = vmax.f32 %v142, 0.0
      %v159 = vmax.f32 %v143, 0.0
      %v160 = vmax.f32 %v144, 0.0
      %v161 = vmax.f32 %v145, 0.0
      %v162 = vmax.f32 %v146, 0.0
      %v163 = vmax.f32 %v147, 0.0
      %v164 = vmax.f32 %v148, 0.0
      %v165 = vmax.f32 %v149, 0.0
      %v166 = vmax.f32 %v150, 0.0
      %v167 = vmax.f32 %v151, 0.0
      %s168 = smul.u32 %s73, 18
      %s169 = smul.addr %s168, 4
      %s170 = scalar_lea.vmem [#allocation2], %s169
      %vm171 = vcmask 257024
      %172 = vst.msk [vmem:[%s170] sm:$0xf] %vm171, 0
      %vm173 = vcmask 253952
      %vm174 = vsmask.f32 256
      %vm175 = vmand %vm173, %vm174
      %v176 = vld [vmem:[%s170 + $0x4] sm:$0x1]
      %v177 = vsel %vm175, 0, %v176
      %178 = vst [vmem:[%s170 + $0x4] sm:$0x1] %v177
      %179 = vst.msk [vmem:[%s170 + $0x48] sm:$0xf] %vm171, 0
      %v180 = vld [vmem:[%s170 + $0x4c] sm:$0x1]
      %v181 = vsel %vm175, 0, %v180
      %182 = vst [vmem:[%s170 + $0x4c] sm:$0x1] %v181
      %v183 = vld [vmem:[%s170] sm:$0x1]
      %v184 = vsel %vm175, 0, %v183
      %185 = vst [vmem:[%s170] sm:$0x1] %v184
      %v186 = vld [vmem:[%s170 + $0x8] sm:$0x1]
      %v187 = vsel %vm175, 0, %v186
      %188 = vst [vmem:[%s170 + $0x8] sm:$0x1] %v187
      %v189 = vld [vmem:[%s170 + $0x10] sm:$0x1]
      %v190 = vsel %vm175, 0, %v189
      %191 = vst [vmem:[%s170 + $0x10] sm:$0x1] %v190
      %v192 = vld [vmem:[%s170 + $0x18] sm:$0x1]
      %v193 = vsel %vm175, 0, %v192
      %194 = vst [vmem:[%s170 + $0x18] sm:$0x1] %v193
      %v195 = vld [vmem:[%s170 + $0x20] sm:$0x1]
      %v196 = vsel %vm175, 0, %v195
      %197 = vst [vmem:[%s170 + $0x20] sm:$0x1] %v196
      %v198 = vld [vmem:[%s170 + $0x28] sm:$0x1]
      %v199 = vsel %vm175, 0, %v198
      %200 = vst [vmem:[%s170 + $0x28] sm:$0x1] %v199
      %v201 = vld [vmem:[%s170 + $0x30] sm:$0x1]
      %v202 = vsel %vm175, 0, %v201
      %203 = vst [vmem:[%s170 + $0x30] sm:$0x1] %v202
      %v204 = vld [vmem:[%s170 + $0x38] sm:$0x1]
      %v205 = vsel %vm175, 0, %v204
      %206 = vst [vmem:[%s170 + $0x38] sm:$0x1] %v205
      %v207 = vld [vmem:[%s170 + $0x40] sm:$0x1]
      %v208 = vsel %vm175, 0, %v207
      %209 = vst [vmem:[%s170 + $0x40] sm:$0x1] %v208
      %v210 = vld [vmem:[%s170 + $0x48] sm:$0x1]
      %v211 = vsel %vm175, 0, %v210
      %212 = vst [vmem:[%s170 + $0x48] sm:$0x1] %v211
      %v213 = vld [vmem:[%s170 + $0x50] sm:$0x1]
      %v214 = vsel %vm175, 0, %v213
      %215 = vst [vmem:[%s170 + $0x50] sm:$0x1] %v214
      %v216 = vld [vmem:[%s170 + $0x58] sm:$0x1]
      %v217 = vsel %vm175, 0, %v216
      %218 = vst [vmem:[%s170 + $0x58] sm:$0x1] %v217
      %v219 = vld [vmem:[%s170 + $0x60] sm:$0x1]
      %v220 = vsel %vm175, 0, %v219
      %221 = vst [vmem:[%s170 + $0x60] sm:$0x1] %v220
      %v222 = vld [vmem:[%s170 + $0x68] sm:$0x1]
      %v223 = vsel %vm175, 0, %v222
      %224 = vst [vmem:[%s170 + $0x68] sm:$0x1] %v223
      %v225 = vld [vmem:[%s170 + $0x70] sm:$0x1]
      %v226 = vsel %vm175, 0, %v225
      %227 = vst [vmem:[%s170 + $0x70] sm:$0x1] %v226
      %v228 = vld [vmem:[%s170 + $0x78] sm:$0x1]
      %v229 = vsel %vm175, 0, %v228
      %230 = vst [vmem:[%s170 + $0x78] sm:$0x1] %v229
      %v231 = vld [vmem:[%s170 + $0x80] sm:$0x1]
      %v232 = vsel %vm175, 0, %v231
      %233 = vst [vmem:[%s170 + $0x80] sm:$0x1] %v232
      %v234 = vld [vmem:[%s170 + $0x88] sm:$0x1]
      %v235 = vsel %vm175, 0, %v234
      %236 = vst [vmem:[%s170 + $0x88] sm:$0x1] %v235
      %v237 = vpack.c.bf16 %v152, %v152
      %v238 = vpack.c.bf16 %v153, %v153
      %v239 = vpack.c.bf16 %v154, %v154
      %v240 = vpack.c.bf16 %v155, %v155
      %v241 = vpack.c.bf16 %v156, %v156
      %v242 = vpack.c.bf16 %v157, %v157
      %v243 = vpack.c.bf16 %v158, %v158
      %v244 = vpack.c.bf16 %v159, %v159
      %v245 = vpack.c.bf16 %v160, %v160
      %v246 = vpack.c.bf16 %v161, %v161
      %v247 = vpack.c.bf16 %v162, %v162
      %v248 = vpack.c.bf16 %v163, %v163
      %v249 = vpack.c.bf16 %v164, %v164
      %v250 = vpack.c.bf16 %v165, %v165
      %v251 = vpack.c.bf16 %v166, %v166
      %v252 = vpack.c.bf16 %v167, %v167
      %v269 = vunpack.c.l.b16 %v237
      %v270 = vunpack.c.l.b16 %v238
      %v271 = vunpack.c.l.b16 %v239
      %v272 = vunpack.c.l.b16 %v240
      %v273 = vunpack.c.l.b16 %v241
      %v274 = vunpack.c.l.b16 %v242
      %v275 = vunpack.c.l.b16 %v243
      %v276 = vunpack.c.l.b16 %v244
      %v277 = vunpack.c.l.b16 %v245
      %v278 = vunpack.c.l.b16 %v246
      %v279 = vunpack.c.l.b16 %v247
      %v280 = vunpack.c.l.b16 %v248
      %v281 = vunpack.c.l.b16 %v249
      %v282 = vunpack.c.l.b16 %v250
      %v283 = vunpack.c.l.b16 %v251
      %v284 = vunpack.c.l.b16 %v252
      %v285 = vpack.c.b16 %v269, %v269
      %v286 = vpack.c.b16 %v270, %v270
      %v287 = vpack.c.b16 %v271, %v271
      %v288 = vpack.c.b16 %v272, %v272
      %v289 = vpack.c.b16 %v273, %v273
      %v290 = vpack.c.b16 %v274, %v274
      %v291 = vpack.c.b16 %v275, %v275
      %v292 = vpack.c.b16 %v276, %v276
      %v293 = vpack.c.b16 %v277, %v277
      %v294 = vpack.c.b16 %v278, %v278
      %v295 = vpack.c.b16 %v279, %v279
      %v296 = vpack.c.b16 %v280, %v280
      %v297 = vpack.c.b16 %v281, %v281
      %v298 = vpack.c.b16 %v282, %v282
      %v299 = vpack.c.b16 %v283, %v283
      %v300 = vpack.c.b16 %v284, %v284
      %v302 = vshrl.u32 %v285, 16
      %v304 = vrot.slane %v302, 7
      %v305 = vshll.u32 %v285, 16
      %v307 = vor.u32 %v304, %v305
      %v308 = vrot.slane %v304, 4
      %v310 = vshrl.u32 %v286, 16
      %v312 = vrot.slane %v310, 7
      %v313 = vshll.u32 %v286, 16
      %v315 = vor.u32 %v312, %v313
      %v316 = vrot.slane %v312, 4
      %v318 = vshrl.u32 %v287, 16
      %v320 = vrot.slane %v318, 7
      %v321 = vshll.u32 %v287, 16
      %v323 = vor.u32 %v320, %v321
      %v324 = vrot.slane %v320, 4
      %v326 = vshrl.u32 %v288, 16
      %v328 = vrot.slane %v326, 7
      %v329 = vshll.u32 %v288, 16
      %v331 = vor.u32 %v328, %v329
      %v332 = vrot.slane %v328, 4
      %v334 = vshrl.u32 %v289, 16
      %v336 = vrot.slane %v334, 7
      %v337 = vshll.u32 %v289, 16
      %v339 = vor.u32 %v336, %v337
      %v340 = vrot.slane %v336, 4
      %v342 = vshrl.u32 %v290, 16
      %v344 = vrot.slane %v342, 7
      %v345 = vshll.u32 %v290, 16
      %v347 = vor.u32 %v344, %v345
      %v348 = vrot.slane %v344, 4
      %v350 = vshrl.u32 %v291, 16
      %v352 = vrot.slane %v350, 7
      %v353 = vshll.u32 %v291, 16
      %v355 = vor.u32 %v352, %v353
      %v356 = vrot.slane %v352, 4
      %v358 = vshrl.u32 %v292, 16
      %v360 = vrot.slane %v358, 7
      %v361 = vshll.u32 %v292, 16
      %v363 = vor.u32 %v360, %v361
      %v364 = vrot.slane %v360, 4
      %v366 = vshrl.u32 %v293, 16
      %v368 = vrot.slane %v366, 7
      %v369 = vshll.u32 %v293, 16
      %v371 = vor.u32 %v368, %v369
      %v372 = vrot.slane %v368, 4
      %v374 = vshrl.u32 %v294, 16
      %v376 = vrot.slane %v374, 7
      %v377 = vshll.u32 %v294, 16
      %v379 = vor.u32 %v376, %v377
      %v380 = vrot.slane %v376, 4
      %v382 = vshrl.u32 %v295, 16
      %v384 = vrot.slane %v382, 7
      %v385 = vshll.u32 %v295, 16
      %v387 = vor.u32 %v384, %v385
      %v388 = vrot.slane %v384, 4
      %v390 = vshrl.u32 %v296, 16
      %v392 = vrot.slane %v390, 7
      %v393 = vshll.u32 %v296, 16
      %v395 = vor.u32 %v392, %v393
      %v396 = vrot.slane %v392, 4
      %v398 = vshrl.u32 %v297, 16
      %v400 = vrot.slane %v398, 7
      %v401 = vshll.u32 %v297, 16
      %v403 = vor.u32 %v400, %v401
      %v404 = vrot.slane %v400, 4
      %v406 = vshrl.u32 %v298, 16
      %v408 = vrot.slane %v406, 7
      %v409 = vshll.u32 %v298, 16
      %v411 = vor.u32 %v408, %v409
      %v412 = vrot.slane %v408, 4
      %v414 = vshrl.u32 %v299, 16
      %v416 = vrot.slane %v414, 7
      %v417 = vshll.u32 %v299, 16
      %v419 = vor.u32 %v416, %v417
      %v420 = vrot.slane %v416, 4
      %v422 = vshrl.u32 %v300, 16
      %v424 = vrot.slane %v422, 7
      %v425 = vshll.u32 %v300, 16
      %v427 = vor.u32 %v424, %v425
      %v428 = vrot.slane %v424, 4
      %s461 = sadd.s32 2, %s168
      %s462 = smul.addr %s461, 4
      %s463 = scalar_lea.vmem [#allocation2], %s462
      %vm464 = vcmask 257024
      %vm465 = vsmask.f32 7938
      %vm466 = vmand %vm464, %vm465
      %v467 = vld [vmem:[%s463] sm:$0xf]
      %v468 = vsel %vm466, %v307, %v467
      %469 = vst [vmem:[%s463] sm:$0xf] %v468
      %v470 = vld [vmem:[%s463 + $0x4] sm:$0x1]
      %v471 = vsel %vm175, %v308, %v470
      %472 = vst [vmem:[%s463 + $0x4] sm:$0x1] %v471
      %v473 = vld [vmem:[%s463 + $0x8] sm:$0xf]
      %v474 = vsel %vm466, %v315, %v473
      %475 = vst [vmem:[%s463 + $0x8] sm:$0xf] %v474
      %v476 = vld [vmem:[%s463 + $0xc] sm:$0x1]
      %v477 = vsel %vm175, %v316, %v476
      %478 = vst [vmem:[%s463 + $0xc] sm:$0x1] %v477
      %v479 = vld [vmem:[%s463 + $0x10] sm:$0xf]
      %v480 = vsel %vm466, %v323, %v479
      %481 = vst [vmem:[%s463 + $0x10] sm:$0xf] %v480
      %v482 = vld [vmem:[%s463 + $0x14] sm:$0x1]
      %v483 = vsel %vm175, %v324, %v482
      %484 = vst [vmem:[%s463 + $0x14] sm:$0x1] %v483
      %v485 = vld [vmem:[%s463 + $0x18] sm:$0xf]
      %v486 = vsel %vm466, %v331, %v485
      %487 = vst [vmem:[%s463 + $0x18] sm:$0xf] %v486
      %v488 = vld [vmem:[%s463 + $0x1c] sm:$0x1]
      %v489 = vsel %vm175, %v332, %v488
      %490 = vst [vmem:[%s463 + $0x1c] sm:$0x1] %v489
      %v491 = vld [vmem:[%s463 + $0x20] sm:$0xf]
      %v492 = vsel %vm466, %v339, %v491
      %493 = vst [vmem:[%s463 + $0x20] sm:$0xf] %v492
      %v494 = vld [vmem:[%s463 + $0x24] sm:$0x1]
      %v495 = vsel %vm175, %v340, %v494
      %496 = vst [vmem:[%s463 + $0x24] sm:$0x1] %v495
      %v497 = vld [vmem:[%s463 + $0x28] sm:$0xf]
      %v498 = vsel %vm466, %v347, %v497
      %499 = vst [vmem:[%s463 + $0x28] sm:$0xf] %v498
      %v500 = vld [vmem:[%s463 + $0x2c] sm:$0x1]
      %v501 = vsel %vm175, %v348, %v500
      %502 = vst [vmem:[%s463 + $0x2c] sm:$0x1] %v501
      %v503 = vld [vmem:[%s463 + $0x30] sm:$0xf]
      %v504 = vsel %vm466, %v355, %v503
      %505 = vst [vmem:[%s463 + $0x30] sm:$0xf] %v504
      %v506 = vld [vmem:[%s463 + $0x34] sm:$0x1]
      %v507 = vsel %vm175, %v356, %v506
      %508 = vst [vmem:[%s463 + $0x34] sm:$0x1] %v507
      %v509 = vld [vmem:[%s463 + $0x38] sm:$0xf]
      %v510 = vsel %vm466, %v363, %v509
      %511 = vst [vmem:[%s463 + $0x38] sm:$0xf] %v510
      %v512 = vld [vmem:[%s463 + $0x3c] sm:$0x1]
      %v513 = vsel %vm175, %v364, %v512
      %514 = vst [vmem:[%s463 + $0x3c] sm:$0x1] %v513
      %v515 = vld [vmem:[%s463 + $0x48] sm:$0xf]
      %v516 = vsel %vm466, %v371, %v515
      %517 = vst [vmem:[%s463 + $0x48] sm:$0xf] %v516
      %v518 = vld [vmem:[%s463 + $0x4c] sm:$0x1]
      %v519 = vsel %vm175, %v372, %v518
      %520 = vst [vmem:[%s463 + $0x4c] sm:$0x1] %v519
      %v521 = vld [vmem:[%s463 + $0x50] sm:$0xf]
      %v522 = vsel %vm466, %v379, %v521
      %523 = vst [vmem:[%s463 + $0x50] sm:$0xf] %v522
      %v524 = vld [vmem:[%s463 + $0x54] sm:$0x1]
      %v525 = vsel %vm175, %v380, %v524
      %526 = vst [vmem:[%s463 + $0x54] sm:$0x1] %v525
      %v527 = vld [vmem:[%s463 + $0x58] sm:$0xf]
      %v528 = vsel %vm466, %v387, %v527
      %529 = vst [vmem:[%s463 + $0x58] sm:$0xf] %v528
      %v530 = vld [vmem:[%s463 + $0x5c] sm:$0x1]
      %v531 = vsel %vm175, %v388, %v530
      %532 = vst [vmem:[%s463 + $0x5c] sm:$0x1] %v531
      %v533 = vld [vmem:[%s463 + $0x60] sm:$0xf]
      %v534 = vsel %vm466, %v395, %v533
      %535 = vst [vmem:[%s463 + $0x60] sm:$0xf] %v534
      %v536 = vld [vmem:[%s463 + $0x64] sm:$0x1]
      %v537 = vsel %vm175, %v396, %v536
      %538 = vst [vmem:[%s463 + $0x64] sm:$0x1] %v537
      %v539 = vld [vmem:[%s463 + $0x68] sm:$0xf]
      %v540 = vsel %vm466, %v403, %v539
      %541 = vst [vmem:[%s463 + $0x68] sm:$0xf] %v540
      %v542 = vld [vmem:[%s463 + $0x6c] sm:$0x1]
      %v543 = vsel %vm175, %v404, %v542
      %544 = vst [vmem:[%s463 + $0x6c] sm:$0x1] %v543
      %v545 = vld [vmem:[%s463 + $0x70] sm:$0xf]
      %v546 = vsel %vm466, %v411, %v545
      %547 = vst [vmem:[%s463 + $0x70] sm:$0xf] %v546
      %v548 = vld [vmem:[%s463 + $0x74] sm:$0x1]
      %v549 = vsel %vm175, %v412, %v548
      %550 = vst [vmem:[%s463 + $0x74] sm:$0x1] %v549
      %v551 = vld [vmem:[%s463 + $0x78] sm:$0xf]
      %v552 = vsel %vm466, %v419, %v551
      %553 = vst [vmem:[%s463 + $0x78] sm:$0xf] %v552
      %v554 = vld [vmem:[%s463 + $0x7c] sm:$0x1]
      %v555 = vsel %vm175, %v420, %v554
      %556 = vst [vmem:[%s463 + $0x7c] sm:$0x1] %v555
      %v557 = vld [vmem:[%s463 + $0x80] sm:$0xf]
      %v558 = vsel %vm466, %v427, %v557
      %559 = vst [vmem:[%s463 + $0x80] sm:$0xf] %v558
      %v560 = vld [vmem:[%s463 + $0x84] sm:$0x1]
      %v561 = vsel %vm175, %v428, %v560
      %562 = vst [vmem:[%s463 + $0x84] sm:$0x1] %v561
    $region17: #{tpu_custom_call.1} parent=1 // pred_fallthru
      _
    %s563 = smul.u32 %s73, 18
    %s564 = smul.addr %s563, 4
    %s565 = scalar_lea.vmem [#allocation2], %s564
    %v566 = vld [vmem:[%s565] sm:$0xf]
    %v567 = vld [vmem:[%s565 + $0x8] sm:$0xf]
    %v568 = vld [vmem:[%s565 + $0x10] sm:$0xf]
    %v569 = vld [vmem:[%s565 + $0x18] sm:$0xf]
    %v570 = vld [vmem:[%s565 + $0x20] sm:$0xf]
    %v571 = vld [vmem:[%s565 + $0x28] sm:$0xf]
    %v572 = vld [vmem:[%s565 + $0x30] sm:$0xf]
    %v573 = vld [vmem:[%s565 + $0x38] sm:$0xf]
    %v574 = vld [vmem:[%s565 + $0x48] sm:$0xf]
    %v575 = vld [vmem:[%s565 + $0x50] sm:$0xf]
    %v576 = vld [vmem:[%s565 + $0x58] sm:$0xf]
    %v577 = vld [vmem:[%s565 + $0x60] sm:$0xf]
    %v578 = vld [vmem:[%s565 + $0x68] sm:$0xf]
    %v579 = vld [vmem:[%s565 + $0x70] sm:$0xf]
    %v580 = vld [vmem:[%s565 + $0x78] sm:$0xf]
    %v581 = vld [vmem:[%s565 + $0x80] sm:$0xf]
    %v582 = vld [vmem:[%s2] sm:$0xf]
    %v583 = vld [vmem:[%s2 + $0x4] sm:$0xf]
    %v584 = vld [vmem:[%s2 + $0x8] sm:$0xf]
    %v585 = vld [vmem:[%s2 + $0xc] sm:$0xf]
    %v586 = vld [vmem:[%s565 + $0x4] sm:$0x1]
    %v587 = vld [vmem:[%s565 + $0xc] sm:$0x1]
    %v588 = vld [vmem:[%s565 + $0x14] sm:$0x1]
    %v589 = vld [vmem:[%s565 + $0x1c] sm:$0x1]
    %v590 = vld [vmem:[%s565 + $0x24] sm:$0x1]
    %v591 = vld [vmem:[%s565 + $0x2c] sm:$0x1]
    %v592 = vld [vmem:[%s565 + $0x34] sm:$0x1]
    %v593 = vld [vmem:[%s565 + $0x3c] sm:$0x1]
    %v594 = vld [vmem:[%s565 + $0x4c] sm:$0x1]
    %v595 = vld [vmem:[%s565 + $0x54] sm:$0x1]
    %v596 = vld [vmem:[%s565 + $0x5c] sm:$0x1]
    %v597 = vld [vmem:[%s565 + $0x64] sm:$0x1]
    %v598 = vld [vmem:[%s565 + $0x6c] sm:$0x1]
    %v599 = vld [vmem:[%s565 + $0x74] sm:$0x1]
    %v600 = vld [vmem:[%s565 + $0x7c] sm:$0x1]
    %v601 = vld [vmem:[%s565 + $0x84] sm:$0x1]
    %vm602 = vsmask.f32 3328
    %vm603 = vsmask.f32 7440
    %vm604 = vmor %vm602, %vm603
    %v606 = vshrl.u32 %v566, 16
    %v608 = vrot.slane %v606, 4
    %v609 = vshll.u32 %v566, 16
    %v611 = vrot.slane %v609, 5
    %v612 = vor.u32 %v608, %v611
    %v613 = vrot.slane %v612, 4
    %v615 = vshll.u32 %v586, 16
    %v617 = vrot.slane %v615, 5
    %v618 = vsel %vm604, %v613, %v617
    %v620 = vshrl.u32 %v567, 16
    %v622 = vrot.slane %v620, 4
    %v623 = vshll.u32 %v567, 16
    %v625 = vrot.slane %v623, 5
    %v626 = vor.u32 %v622, %v625
    %v627 = vrot.slane %v626, 4
    %v629 = vshll.u32 %v587, 16
    %v631 = vrot.slane %v629, 5
    %v632 = vsel %vm604, %v627, %v631
    %v634 = vshrl.u32 %v568, 16
    %v636 = vrot.slane %v634, 4
    %v637 = vshll.u32 %v568, 16
    %v639 = vrot.slane %v637, 5
    %v640 = vor.u32 %v636, %v639
    %v641 = vrot.slane %v640, 4
    %v643 = vshll.u32 %v588, 16
    %v645 = vrot.slane %v643, 5
    %v646 = vsel %vm604, %v641, %v645
    %v648 = vshrl.u32 %v569, 16
    %v650 = vrot.slane %v648, 4
    %v651 = vshll.u32 %v569, 16
    %v653 = vrot.slane %v651, 5
    %v654 = vor.u32 %v650, %v653
    %v655 = vrot.slane %v654, 4
    %v657 = vshll.u32 %v589, 16
    %v659 = vrot.slane %v657, 5
    %v660 = vsel %vm604, %v655, %v659
    %v662 = vshrl.u32 %v570, 16
    %v664 = vrot.slane %v662, 4
    %v665 = vshll.u32 %v570, 16
    %v667 = vrot.slane %v665, 5
    %v668 = vor.u32 %v664, %v667
    %v669 = vrot.slane %v668, 4
    %v671 = vshll.u32 %v590, 16
    %v673 = vrot.slane %v671, 5
    %v674 = vsel %vm604, %v669, %v673
    %v676 = vshrl.u32 %v571, 16
    %v678 = vrot.slane %v676, 4
    %v679 = vshll.u32 %v571, 16
    %v681 = vrot.slane %v679, 5
    %v682 = vor.u32 %v678, %v681
    %v683 = vrot.slane %v682, 4
    %v685 = vshll.u32 %v591, 16
    %v687 = vrot.slane %v685, 5
    %v688 = vsel %vm604, %v683, %v687
    %v690 = vshrl.u32 %v572, 16
    %v692 = vrot.slane %v690, 4
    %v693 = vshll.u32 %v572, 16
    %v695 = vrot.slane %v693, 5
    %v696 = vor.u32 %v692, %v695
    %v697 = vrot.slane %v696, 4
    %v699 = vshll.u32 %v592, 16
    %v701 = vrot.slane %v699, 5
    %v702 = vsel %vm604, %v697, %v701
    %v704 = vshrl.u32 %v573, 16
    %v706 = vrot.slane %v704, 4
    %v707 = vshll.u32 %v573, 16
    %v709 = vrot.slane %v707, 5
    %v710 = vor.u32 %v706, %v709
    %v711 = vrot.slane %v710, 4
    %v713 = vshll.u32 %v593, 16
    %v715 = vrot.slane %v713, 5
    %v716 = vsel %vm604, %v711, %v715
    %v718 = vshrl.u32 %v574, 16
    %v720 = vrot.slane %v718, 4
    %v721 = vshll.u32 %v574, 16
    %v723 = vrot.slane %v721, 5
    %v724 = vor.u32 %v720, %v723
    %v725 = vrot.slane %v724, 4
    %v727 = vshll.u32 %v594, 16
    %v729 = vrot.slane %v727, 5
    %v730 = vsel %vm604, %v725, %v729
    %v732 = vshrl.u32 %v575, 16
    %v734 = vrot.slane %v732, 4
    %v735 = vshll.u32 %v575, 16
    %v737 = vrot.slane %v735, 5
    %v738 = vor.u32 %v734, %v737
    %v739 = vrot.slane %v738, 4
    %v741 = vshll.u32 %v595, 16
    %v743 = vrot.slane %v741, 5
    %v744 = vsel %vm604, %v739, %v743
    %v746 = vshrl.u32 %v576, 16
    %v748 = vrot.slane %v746, 4
    %v749 = vshll.u32 %v576, 16
    %v751 = vrot.slane %v749, 5
    %v752 = vor.u32 %v748, %v751
    %v753 = vrot.slane %v752, 4
    %v755 = vshll.u32 %v596, 16
    %v757 = vrot.slane %v755, 5
    %v758 = vsel %vm604, %v753, %v757
    %v760 = vshrl.u32 %v577, 16
    %v762 = vrot.slane %v760, 4
    %v763 = vshll.u32 %v577, 16
    %v765 = vrot.slane %v763, 5
    %v766 = vor.u32 %v762, %v765
    %v767 = vrot.slane %v766, 4
    %v769 = vshll.u32 %v597, 16
    %v771 = vrot.slane %v769, 5
    %v772 = vsel %vm604, %v767, %v771
    %v774 = vshrl.u32 %v578, 16
    %v776 = vrot.slane %v774, 4
    %v777 = vshll.u32 %v578, 16
    %v779 = vrot.slane %v777, 5
    %v780 = vor.u32 %v776, %v779
    %v781 = vrot.slane %v780, 4
    %v783 = vshll.u32 %v598, 16
    %v785 = vrot.slane %v783, 5
    %v786 = vsel %vm604, %v781, %v785
    %v788 = vshrl.u32 %v579, 16
    %v790 = vrot.slane %v788, 4
    %v791 = vshll.u32 %v579, 16
    %v793 = vrot.slane %v791, 5
    %v794 = vor.u32 %v790, %v793
    %v795 = vrot.slane %v794, 4
    %v797 = vshll.u32 %v599, 16
    %v799 = vrot.slane %v797, 5
    %v800 = vsel %vm604, %v795, %v799
    %v802 = vshrl.u32 %v580, 16
    %v804 = vrot.slane %v802, 4
    %v805 = vshll.u32 %v580, 16
    %v807 = vrot.slane %v805, 5
    %v808 = vor.u32 %v804, %v807
    %v809 = vrot.slane %v808, 4
    %v811 = vshll.u32 %v600, 16
    %v813 = vrot.slane %v811, 5
    %v814 = vsel %vm604, %v809, %v813
    %v816 = vshrl.u32 %v581, 16
    %v818 = vrot.slane %v816, 4
    %v819 = vshll.u32 %v581, 16
    %v821 = vrot.slane %v819, 5
    %v822 = vor.u32 %v818, %v821
    %v823 = vrot.slane %v822, 4
    %v825 = vshll.u32 %v601, 16
    %v827 = vrot.slane %v825, 5
    %v828 = vsel %vm604, %v823, %v827
    %s829 = scalar_lea.vmem %s2, 16
    %v830 = vld [vmem:[%s829] sm:$0xf]
    %v831 = vld [vmem:[%s829 + $0x4] sm:$0xf]
    %v832 = vld [vmem:[%s829 + $0x8] sm:$0xf]
    %v833 = vld [vmem:[%s829 + $0xc] sm:$0xf]
    %v834 = vunpack.c.l.b16 %v618
    %v835 = vunpack.c.l.b16 %v632
    %v836 = vunpack.c.l.b16 %v646
    %v837 = vunpack.c.l.b16 %v660
    %v838 = vunpack.c.l.b16 %v674
    %v839 = vunpack.c.l.b16 %v688
    %v840 = vunpack.c.l.b16 %v702
    %v841 = vunpack.c.l.b16 %v716
    %v842 = vunpack.c.l.b16 %v730
    %v843 = vunpack.c.l.b16 %v744
    %v844 = vunpack.c.l.b16 %v758
    %v845 = vunpack.c.l.b16 %v772
    %v846 = vunpack.c.l.b16 %v786
    %v847 = vunpack.c.l.b16 %v800
    %v848 = vunpack.c.l.b16 %v814
    %v849 = vunpack.c.l.b16 %v828
    %v850 = vpack.c.b16 %v835, %v834
    %v851 = vpack.c.b16 %v837, %v836
    %v852 = vpack.c.b16 %v839, %v838
    %v853 = vpack.c.b16 %v841, %v840
    %v854 = vpack.c.b16 %v843, %v842
    %v855 = vpack.c.b16 %v845, %v844
    %v856 = vpack.c.b16 %v847, %v846
    %v857 = vpack.c.b16 %v849, %v848
    %v862 = vunpack.c.l.b16 %v830
    %v863 = vunpack.c.l.b16 %v831
    %v864 = vunpack.c.l.b16 %v832
    %v865 = vunpack.c.l.b16 %v833
    %v866 = vpack.c.b16 %v863, %v862
    %v867 = vpack.c.b16 %v865, %v864
    %vm870 = vcmask 261120
    %v872 = vsel %vm870, %v850, 0
    %v875 = vsel %vm870, %v851, 0
    %v878 = vsel %vm870, %v852, 0
    %v881 = vsel %vm870, %v853, 0
    %v884 = vsel %vm870, %v854, 0
    %v887 = vsel %vm870, %v855, 0
    %v890 = vsel %vm870, %v856, 0
    %v893 = vsel %vm870, %v857, 0
    %895 = vmatprep.subr.bf16.mxu0 0
    %896 = vmatpush1.bf16.msra.mxu0 %v866
    %897 = vmatprep.subr.bf16.mxu0 0
    %898 = vmatpush1.bf16.msra.mxu0 %v867
    %899 = vmatprep.subr.bf16.mxu0 0
    %900 = vmatpush1.bf16.msra.mxu0 0
    %901 = vmatprep.subr.bf16.mxu0 0
    %902 = vmatpush1.bf16.msra.mxu0 0
    %903 = vmatprep.subr.bf16.mxu0 0
    %904 = vmatpush1.bf16.msra.mxu0 0
    %905 = vmatprep.subr.bf16.mxu0 0
    %906 = vmatpush1.bf16.msra.mxu0 0
    %907 = vmatprep.subr.bf16.mxu0 0
    %908 = vmatpush1.bf16.msra.mxu0 0
    %909 = vmatprep.subr.bf16.mxu0 0
    %910 = vmatpush1.bf16.msra.mxu0 0
    %911 = vmatprep.subr.bf16.mxu0 0
    %912 = vmatpush1.bf16.msra.mxu0 0
    %913 = vmatprep.subr.bf16.mxu0 0
    %914 = vmatpush1.bf16.msra.mxu0 0
    %915 = vmatprep.subr.bf16.mxu0 0
    %916 = vmatpush1.bf16.msra.mxu0 0
    %917 = vmatprep.subr.bf16.mxu0 0
    %918 = vmatpush1.bf16.msra.mxu0 0
    %919 = vmatprep.subr.bf16.mxu0 0
    %920 = vmatpush1.bf16.msra.mxu0 0
    %921 = vmatprep.subr.bf16.mxu0 0
    %922 = vmatpush1.bf16.msra.mxu0 0
    %923 = vmatprep.subr.bf16.mxu0 0
    %924 = vmatpush1.bf16.msra.mxu0 0
    %925 = vmatprep.subr.bf16.mxu0 0
    %926 = vmatpush1.bf16.msra.mxu0 0
    %927 = vmatprep.mubr.bf16.mxu0 0
    %928 = vmatmul.mubr.bf16.gmra.mrb[0].mxu0 %v872
    %v929 = vpop.f32.mrb[0].mxu0
    %v930 = vadd.f32 0.0, %v929
    %v931 = vpop.f32.mrb[0].mxu0
    %v932 = vpop.f32.mrb[0].mxu0
    %v933 = vadd.f32 0.0, %v932
    %v934 = vpop.f32.mrb[0].mxu0
    %935 = vmatprep.mubr.bf16.mxu0 0
    %936 = vmatmul.mubr.bf16.gmra.mrb[0].mxu0 %v875
    %v937 = vpop.f32.mrb[0].mxu0
    %v938 = vadd.f32 0.0, %v937
    %v939 = vpop.f32.mrb[0].mxu0
    %v940 = vpop.f32.mrb[0].mxu0
    %v941 = vadd.f32 0.0, %v940
    %v942 = vpop.f32.mrb[0].mxu0
    %943 = vmatprep.mubr.bf16.mxu0 0
    %944 = vmatmul.mubr.bf16.gmra.mrb[0].mxu0 %v878
    %v945 = vpop.f32.mrb[0].mxu0
    %v946 = vadd.f32 0.0, %v945
    %v947 = vpop.f32.mrb[0].mxu0
    %v948 = vpop.f32.mrb[0].mxu0
    %v949 = vadd.f32 0.0, %v948
    %v950 = vpop.f32.mrb[0].mxu0
    %951 = vmatprep.mubr.bf16.mxu0 0
    %952 = vmatmul.mubr.bf16.gmra.mrb[0].mxu0 %v881
    %v953 = vpop.f32.mrb[0].mxu0
    %v954 = vadd.f32 0.0, %v953
    %v955 = vpop.f32.mrb[0].mxu0
    %v956 = vpop.f32.mrb[0].mxu0
    %v957 = vadd.f32 0.0, %v956
    %v958 = vpop.f32.mrb[0].mxu0
    %959 = vmatprep.mubr.bf16.mxu0 0
    %960 = vmatmul.mubr.bf16.gmra.mrb[0].mxu0 %v884
    %v961 = vpop.f32.mrb[0].mxu0
    %v962 = vadd.f32 0.0, %v961
    %v963 = vpop.f32.mrb[0].mxu0
    %v964 = vpop.f32.mrb[0].mxu0
    %v965 = vadd.f32 0.0, %v964
    %v966 = vpop.f32.mrb[0].mxu0
    %967 = vmatprep.mubr.bf16.mxu0 0
    %968 = vmatmul.mubr.bf16.gmra.mrb[0].mxu0 %v887
    %v969 = vpop.f32.mrb[0].mxu0
    %v970 = vadd.f32 0.0, %v969
    %v971 = vpop.f32.mrb[0].mxu0
    %v972 = vpop.f32.mrb[0].mxu0
    %v973 = vadd.f32 0.0, %v972
    %v974 = vpop.f32.mrb[0].mxu0
    %975 = vmatprep.mubr.bf16.mxu0 0
    %976 = vmatmul.mubr.bf16.gmra.mrb[0].mxu0 %v890
    %v977 = vpop.f32.mrb[0].mxu0
    %v978 = vadd.f32 0.0, %v977
    %v979 = vpop.f32.mrb[0].mxu0
    %v980 = vpop.f32.mrb[0].mxu0
    %v981 = vadd.f32 0.0, %v980
    %v982 = vpop.f32.mrb[0].mxu0
    %983 = vmatprep.mubr.bf16.mxu0 0
    %984 = vmatmul.mubr.bf16.gmra.mrb[0].mxu0 %v893
    %v985 = vpop.f32.mrb[0].mxu0
    %v986 = vadd.f32 0.0, %v985
    %v987 = vpop.f32.mrb[0].mxu0
    %v988 = vpop.f32.mrb[0].mxu0
    %v989 = vadd.f32 0.0, %v988
    %v990 = vpop.f32.mrb[0].mxu0
    %991 = vdwg.mxu0
    %v1008 = vunpack.c.l.b16 %v566
    %v1009 = vunpack.c.l.b16 %v567
    %v1010 = vunpack.c.l.b16 %v568
    %v1011 = vunpack.c.l.b16 %v569
    %v1012 = vunpack.c.l.b16 %v570
    %v1013 = vunpack.c.l.b16 %v571
    %v1014 = vunpack.c.l.b16 %v572
    %v1015 = vunpack.c.l.b16 %v573
    %v1016 = vunpack.c.l.b16 %v574
    %v1017 = vunpack.c.l.b16 %v575
    %v1018 = vunpack.c.l.b16 %v576
    %v1019 = vunpack.c.l.b16 %v577
    %v1020 = vunpack.c.l.b16 %v578
    %v1021 = vunpack.c.l.b16 %v579
    %v1022 = vunpack.c.l.b16 %v580
    %v1023 = vunpack.c.l.b16 %v581
    %v1024 = vpack.c.b16 %v1009, %v1008
    %v1025 = vpack.c.b16 %v1011, %v1010
    %v1026 = vpack.c.b16 %v1013, %v1012
    %v1027 = vpack.c.b16 %v1015, %v1014
    %v1028 = vpack.c.b16 %v1017, %v1016
    %v1029 = vpack.c.b16 %v1019, %v1018
    %v1030 = vpack.c.b16 %v1021, %v1020
    %v1031 = vpack.c.b16 %v1023, %v1022
    %v1036 = vunpack.c.l.b16 %v582
    %v1037 = vunpack.c.l.b16 %v583
    %v1038 = vunpack.c.l.b16 %v584
    %v1039 = vunpack.c.l.b16 %v585
    %v1040 = vpack.c.b16 %v1037, %v1036
    %v1041 = vpack.c.b16 %v1039, %v1038
    %v1045 = vsel %vm870, %v1024, 0
    %v1048 = vsel %vm870, %v1025, 0
    %v1051 = vsel %vm870, %v1026, 0
    %v1054 = vsel %vm870, %v1027, 0
    %v1057 = vsel %vm870, %v1028, 0
    %v1060 = vsel %vm870, %v1029, 0
    %v1063 = vsel %vm870, %v1030, 0
    %v1066 = vsel %vm870, %v1031, 0
    %1068 = vmatprep.subr.bf16.mxu0 0
    %1069 = vmatpush1.bf16.msra.mxu0 %v1040
    %1070 = vmatprep.subr.bf16.mxu0 0
    %1071 = vmatpush1.bf16.msra.mxu0 %v1041
    %1072 = vmatprep.subr.bf16.mxu0 0
    %1073 = vmatpush1.bf16.msra.mxu0 0
    %1074 = vmatprep.subr.bf16.mxu0 0
    %1075 = vmatpush1.bf16.msra.mxu0 0
    %1076 = vmatprep.subr.bf16.mxu0 0
    %1077 = vmatpush1.bf16.msra.mxu0 0
    %1078 = vmatprep.subr.bf16.mxu0 0
    %1079 = vmatpush1.bf16.msra.mxu0 0
    %1080 = vmatprep.subr.bf16.mxu0 0
    %1081 = vmatpush1.bf16.msra.mxu0 0
    %1082 = vmatprep.subr.bf16.mxu0 0
    %1083 = vmatpush1.bf16.msra.mxu0 0
    %1084 = vmatprep.subr.bf16.mxu0 0
    %1085 = vmatpush1.bf16.msra.mxu0 0
    %1086 = vmatprep.subr.bf16.mxu0 0
    %1087 = vmatpush1.bf16.msra.mxu0 0
    %1088 = vmatprep.subr.bf16.mxu0 0
    %1089 = vmatpush1.bf16.msra.mxu0 0
    %1090 = vmatprep.subr.bf16.mxu0 0
    %1091 = vmatpush1.bf16.msra.mxu0 0
    %1092 = vmatprep.subr.bf16.mxu0 0
    %1093 = vmatpush1.bf16.msra.mxu0 0
    %1094 = vmatprep.subr.bf16.mxu0 0
    %1095 = vmatpush1.bf16.msra.mxu0 0
    %1096 = vmatprep.subr.bf16.mxu0 0
    %1097 = vmatpush1.bf16.msra.mxu0 0
    %1098 = vmatprep.subr.bf16.mxu0 0
    %1099 = vmatpush1.bf16.msra.mxu0 0
    %1100 = vmatprep.mubr.bf16.mxu0 0
    %1101 = vmatmul.mubr.bf16.gmra.mrb[0].mxu0 %v1045
    %v1102 = vpop.f32.mrb[0].mxu0
    %v1103 = vadd.f32 %v930, %v1102
    %v1104 = vpop.f32.mrb[0].mxu0
    %v1105 = vpop.f32.mrb[0].mxu0
    %v1106 = vadd.f32 %v933, %v1105
    %v1107 = vpop.f32.mrb[0].mxu0
    %1108 = vmatprep.mubr.bf16.mxu0 0
    %1109 = vmatmul.mubr.bf16.gmra.mrb[0].mxu0 %v1048
    %v1110 = vpop.f32.mrb[0].mxu0
    %v1111 = vadd.f32 %v938, %v1110
    %v1112 = vpop.f32.mrb[0].mxu0
    %v1113 = vpop.f32.mrb[0].mxu0
    %v1114 = vadd.f32 %v941, %v1113
    %v1115 = vpop.f32.mrb[0].mxu0
    %1116 = vmatprep.mubr.bf16.mxu0 0
    %1117 = vmatmul.mubr.bf16.gmra.mrb[0].mxu0 %v1051
    %v1118 = vpop.f32.mrb[0].mxu0
    %v1119 = vadd.f32 %v946, %v1118
    %v1120 = vpop.f32.mrb[0].mxu0
    %v1121 = vpop.f32.mrb[0].mxu0
    %v1122 = vadd.f32 %v949, %v1121
    %v1123 = vpop.f32.mrb[0].mxu0
    %1124 = vmatprep.mubr.bf16.mxu0 0
    %1125 = vmatmul.mubr.bf16.gmra.mrb[0].mxu0 %v1054
    %v1126 = vpop.f32.mrb[0].mxu0
    %v1127 = vadd.f32 %v954, %v1126
    %v1128 = vpop.f32.mrb[0].mxu0
    %v1129 = vpop.f32.mrb[0].mxu0
    %v1130 = vadd.f32 %v957, %v1129
    %v1131 = vpop.f32.mrb[0].mxu0
    %1132 = vmatprep.mubr.bf16.mxu0 0
    %1133 = vmatmul.mubr.bf16.gmra.mrb[0].mxu0 %v1057
    %v1134 = vpop.f32.mrb[0].mxu0
    %v1135 = vadd.f32 %v962, %v1134
    %v1136 = vpop.f32.mrb[0].mxu0
    %v1137 = vpop.f32.mrb[0].mxu0
    %v1138 = vadd.f32 %v965, %v1137
    %v1139 = vpop.f32.mrb[0].mxu0
    %1140 = vmatprep.mubr.bf16.mxu0 0
    %1141 = vmatmul.mubr.bf16.gmra.mrb[0].mxu0 %v1060
    %v1142 = vpop.f32.mrb[0].mxu0
    %v1143 = vadd.f32 %v970, %v1142
    %v1144 = vpop.f32.mrb[0].mxu0
    %v1145 = vpop.f32.mrb[0].mxu0
    %v1146 = vadd.f32 %v973, %v1145
    %v1147 = vpop.f32.mrb[0].mxu0
    %1148 = vmatprep.mubr.bf16.mxu0 0
    %1149 = vmatmul.mubr.bf16.gmra.mrb[0].mxu0 %v1063
    %v1150 = vpop.f32.mrb[0].mxu0
    %v1151 = vadd.f32 %v978, %v1150
    %v1152 = vpop.f32.mrb[0].mxu0
    %v1153 = vpop.f32.mrb[0].mxu0
    %v1154 = vadd.f32 %v981, %v1153
    %v1155 = vpop.f32.mrb[0].mxu0
    %1156 = vmatprep.mubr.bf16.mxu0 0
    %1157 = vmatmul.mubr.bf16.gmra.mrb[0].mxu0 %v1066
    %v1158 = vpop.f32.mrb[0].mxu0
    %v1159 = vadd.f32 %v986, %v1158
    %v1160 = vpop.f32.mrb[0].mxu0
    %v1161 = vpop.f32.mrb[0].mxu0
    %v1162 = vadd.f32 %v989, %v1161
    %v1163 = vpop.f32.mrb[0].mxu0
    %1164 = vdwg.mxu0
    %s1165 = sadd.s32 2, %s563
    %s1166 = smul.addr %s1165, 4
    %s1167 = scalar_lea.vmem [#allocation2], %s1166
    %v1168 = vld [vmem:[%s1167] sm:$0xf]
    %v1169 = vld [vmem:[%s1167 + $0x8] sm:$0xf]
    %v1170 = vld [vmem:[%s1167 + $0x10] sm:$0xf]
    %v1171 = vld [vmem:[%s1167 + $0x18] sm:$0xf]
    %v1172 = vld [vmem:[%s1167 + $0x20] sm:$0xf]
    %v1173 = vld [vmem:[%s1167 + $0x28] sm:$0xf]
    %v1174 = vld [vmem:[%s1167 + $0x30] sm:$0xf]
    %v1175 = vld [vmem:[%s1167 + $0x38] sm:$0xf]
    %v1176 = vld [vmem:[%s1167 + $0x48] sm:$0xf]
    %v1177 = vld [vmem:[%s1167 + $0x50] sm:$0xf]
    %v1178 = vld [vmem:[%s1167 + $0x58] sm:$0xf]
    %v1179 = vld [vmem:[%s1167 + $0x60] sm:$0xf]
    %v1180 = vld [vmem:[%s1167 + $0x68] sm:$0xf]
    %v1181 = vld [vmem:[%s1167 + $0x70] sm:$0xf]
    %v1182 = vld [vmem:[%s1167 + $0x78] sm:$0xf]
    %v1183 = vld [vmem:[%s1167 + $0x80] sm:$0xf]
    %s1184 = scalar_lea.vmem %s2, 32
    %v1185 = vld [vmem:[%s1184] sm:$0xf]
    %v1186 = vld [vmem:[%s1184 + $0x4] sm:$0xf]
    %v1187 = vld [vmem:[%s1184 + $0x8] sm:$0xf]
    %v1188 = vld [vmem:[%s1184 + $0xc] sm:$0xf]
    %v1205 = vunpack.c.l.b16 %v1168
    %v1206 = vunpack.c.l.b16 %v1169
    %v1207 = vunpack.c.l.b16 %v1170
    %v1208 = vunpack.c.l.b16 %v1171
    %v1209 = vunpack.c.l.b16 %v1172
    %v1210 = vunpack.c.l.b16 %v1173
    %v1211 = vunpack.c.l.b16 %v1174
    %v1212 = vunpack.c.l.b16 %v1175
    %v1213 = vunpack.c.l.b16 %v1176
    %v1214 = vunpack.c.l.b16 %v1177
    %v1215 = vunpack.c.l.b16 %v1178
    %v1216 = vunpack.c.l.b16 %v1179
    %v1217 = vunpack.c.l.b16 %v1180
    %v1218 = vunpack.c.l.b16 %v1181
    %v1219 = vunpack.c.l.b16 %v1182
    %v1220 = vunpack.c.l.b16 %v1183
    %v1221 = vpack.c.b16 %v1206, %v1205
    %v1222 = vpack.c.b16 %v1208, %v1207
    %v1223 = vpack.c.b16 %v1210, %v1209
    %v1224 = vpack.c.b16 %v1212, %v1211
    %v1225 = vpack.c.b16 %v1214, %v1213
    %v1226 = vpack.c.b16 %v1216, %v1215
    %v1227 = vpack.c.b16 %v1218, %v1217
    %v1228 = vpack.c.b16 %v1220, %v1219
    %v1233 = vunpack.c.l.b16 %v1185
    %v1234 = vunpack.c.l.b16 %v1186
    %v1235 = vunpack.c.l.b16 %v1187
    %v1236 = vunpack.c.l.b16 %v1188
    %v1237 = vpack.c.b16 %v1234, %v1233
    %v1238 = vpack.c.b16 %v1236, %v1235
    %v1242 = vsel %vm870, %v1221, 0
    %v1245 = vsel %vm870, %v1222, 0
    %v1248 = vsel %vm870, %v1223, 0
    %v1251 = vsel %vm870, %v1224, 0
    %v1254 = vsel %vm870, %v1225, 0
    %v1257 = vsel %vm870, %v1226, 0
    %v1260 = vsel %vm870, %v1227, 0
    %v1263 = vsel %vm870, %v1228, 0
    %1265 = vmatprep.subr.bf16.mxu0 0
    %1266 = vmatpush1.bf16.msra.mxu0 %v1237
    %1267 = vmatprep.subr.bf16.mxu0 0
    %1268 = vmatpush1.bf16.msra.mxu0 %v1238
    %1269 = vmatprep.subr.bf16.mxu0 0
    %1270 = vmatpush1.bf16.msra.mxu0 0
    %1271 = vmatprep.subr.bf16.mxu0 0
    %1272 = vmatpush1.bf16.msra.mxu0 0
    %1273 = vmatprep.subr.bf16.mxu0 0
    %1274 = vmatpush1.bf16.msra.mxu0 0
    %1275 = vmatprep.subr.bf16.mxu0 0
    %1276 = vmatpush1.bf16.msra.mxu0 0
    %1277 = vmatprep.subr.bf16.mxu0 0
    %1278 = vmatpush1.bf16.msra.mxu0 0
    %1279 = vmatprep.subr.bf16.mxu0 0
    %1280 = vmatpush1.bf16.msra.mxu0 0
    %1281 = vmatprep.subr.bf16.mxu0 0
    %1282 = vmatpush1.bf16.msra.mxu0 0
    %1283 = vmatprep.subr.bf16.mxu0 0
    %1284 = vmatpush1.bf16.msra.mxu0 0
    %1285 = vmatprep.subr.bf16.mxu0 0
    %1286 = vmatpush1.bf16.msra.mxu0 0
    %1287 = vmatprep.subr.bf16.mxu0 0
    %1288 = vmatpush1.bf16.msra.mxu0 0
    %1289 = vmatprep.subr.bf16.mxu0 0
    %1290 = vmatpush1.bf16.msra.mxu0 0
    %1291 = vmatprep.subr.bf16.mxu0 0
    %1292 = vmatpush1.bf16.msra.mxu0 0
    %1293 = vmatprep.subr.bf16.mxu0 0
    %1294 = vmatpush1.bf16.msra.mxu0 0
    %1295 = vmatprep.subr.bf16.mxu0 0
    %1296 = vmatpush1.bf16.msra.mxu0 0
    %1297 = vmatprep.mubr.bf16.mxu0 0
    %1298 = vmatmul.mubr.bf16.gmra.mrb[0].mxu0 %v1242
    %v1299 = vpop.f32.mrb[0].mxu0
    %v1300 = vadd.f32 0.0, %v1299
    %v1301 = vpop.f32.mrb[0].mxu0
    %v1302 = vpop.f32.mrb[0].mxu0
    %v1303 = vadd.f32 0.0, %v1302
    %v1304 = vpop.f32.mrb[0].mxu0
    %1305 = vmatprep.mubr.bf16.mxu0 0
    %1306 = vmatmul.mubr.bf16.gmra.mrb[0].mxu0 %v1245
    %v1307 = vpop.f32.mrb[0].mxu0
    %v1308 = vadd.f32 0.0, %v1307
    %v1309 = vpop.f32.mrb[0].mxu0
    %v1310 = vpop.f32.mrb[0].mxu0
    %v1311 = vadd.f32 0.0, %v1310
    %v1312 = vpop.f32.mrb[0].mxu0
    %1313 = vmatprep.mubr.bf16.mxu0 0
    %1314 = vmatmul.mubr.bf16.gmra.mrb[0].mxu0 %v1248
    %v1315 = vpop.f32.mrb[0].mxu0
    %v1316 = vadd.f32 0.0, %v1315
    %v1317 = vpop.f32.mrb[0].mxu0
    %v1318 = vpop.f32.mrb[0].mxu0
    %v1319 = vadd.f32 0.0, %v1318
    %v1320 = vpop.f32.mrb[0].mxu0
    %1321 = vmatprep.mubr.bf16.mxu0 0
    %1322 = vmatmul.mubr.bf16.gmra.mrb[0].mxu0 %v1251
    %v1323 = vpop.f32.mrb[0].mxu0
    %v1324 = vadd.f32 0.0, %v1323
    %v1325 = vpop.f32.mrb[0].mxu0
    %v1326 = vpop.f32.mrb[0].mxu0
    %v1327 = vadd.f32 0.0, %v1326
    %v1328 = vpop.f32.mrb[0].mxu0
    %1329 = vmatprep.mubr.bf16.mxu0 0
    %1330 = vmatmul.mubr.bf16.gmra.mrb[0].mxu0 %v1254
    %v1331 = vpop.f32.mrb[0].mxu0
    %v1332 = vadd.f32 0.0, %v1331
    %v1333 = vpop.f32.mrb[0].mxu0
    %v1334 = vpop.f32.mrb[0].mxu0
    %v1335 = vadd.f32 0.0, %v1334
    %v1336 = vpop.f32.mrb[0].mxu0
    %1337 = vmatprep.mubr.bf16.mxu0 0
    %1338 = vmatmul.mubr.bf16.gmra.mrb[0].mxu0 %v1257
    %v1339 = vpop.f32.mrb[0].mxu0
    %v1340 = vadd.f32 0.0, %v1339
    %v1341 = vpop.f32.mrb[0].mxu0
    %v1342 = vpop.f32.mrb[0].mxu0
    %v1343 = vadd.f32 0.0, %v1342
    %v1344 = vpop.f32.mrb[0].mxu0
    %1345 = vmatprep.mubr.bf16.mxu0 0
    %1346 = vmatmul.mubr.bf16.gmra.mrb[0].mxu0 %v1260
    %v1347 = vpop.f32.mrb[0].mxu0
    %v1348 = vadd.f32 0.0, %v1347
    %v1349 = vpop.f32.mrb[0].mxu0
    %v1350 = vpop.f32.mrb[0].mxu0
    %v1351 = vadd.f32 0.0, %v1350
    %v1352 = vpop.f32.mrb[0].mxu0
    %1353 = vmatprep.mubr.bf16.mxu0 0
    %1354 = vmatmul.mubr.bf16.gmra.mrb[0].mxu0 %v1263
    %v1355 = vpop.f32.mrb[0].mxu0
    %v1356 = vadd.f32 0.0, %v1355
    %v1357 = vpop.f32.mrb[0].mxu0
    %v1358 = vpop.f32.mrb[0].mxu0
    %v1359 = vadd.f32 0.0, %v1358
    %v1360 = vpop.f32.mrb[0].mxu0
    %1361 = vdwg.mxu0
    %v1362 = vadd.f32 %v1103, %v1300
    %v1363 = vadd.f32 %v1106, %v1303
    %v1364 = vadd.f32 %v1111, %v1308
    %v1365 = vadd.f32 %v1114, %v1311
    %v1366 = vadd.f32 %v1119, %v1316
    %v1367 = vadd.f32 %v1122, %v1319
    %v1368 = vadd.f32 %v1127, %v1324
    %v1369 = vadd.f32 %v1130, %v1327
    %v1370 = vadd.f32 %v1135, %v1332
    %v1371 = vadd.f32 %v1138, %v1335
    %v1372 = vadd.f32 %v1143, %v1340
    %v1373 = vadd.f32 %v1146, %v1343
    %v1374 = vadd.f32 %v1151, %v1348
    %v1375 = vadd.f32 %v1154, %v1351
    %v1376 = vadd.f32 %v1159, %v1356
    %v1377 = vadd.f32 %v1162, %v1359
    %v1378 = vld [vmem:[%s1167] sm:$0xf]
    %v1379 = vld [vmem:[%s1167 + $0x4] sm:$0x1]
    %v1380 = vld [vmem:[%s1167 + $0x8] sm:$0xf]
    %v1381 = vld [vmem:[%s1167 + $0xc] sm:$0x1]
    %v1382 = vld [vmem:[%s1167 + $0x10] sm:$0xf]
    %v1383 = vld [vmem:[%s1167 + $0x14] sm:$0x1]
    %v1384 = vld [vmem:[%s1167 + $0x18] sm:$0xf]
    %v1385 = vld [vmem:[%s1167 + $0x1c] sm:$0x1]
    %v1386 = vld [vmem:[%s1167 + $0x20] sm:$0xf]
    %v1387 = vld [vmem:[%s1167 + $0x24] sm:$0x1]
    %v1388 = vld [vmem:[%s1167 + $0x28] sm:$0xf]
    %v1389 = vld [vmem:[%s1167 + $0x2c] sm:$0x1]
    %v1390 = vld [vmem:[%s1167 + $0x30] sm:$0xf]
    %v1391 = vld [vmem:[%s1167 + $0x34] sm:$0x1]
    %v1392 = vld [vmem:[%s1167 + $0x38] sm:$0xf]
    %v1393 = vld [vmem:[%s1167 + $0x3c] sm:$0x1]
    %v1394 = vld [vmem:[%s1167 + $0x48] sm:$0xf]
    %v1395 = vld [vmem:[%s1167 + $0x4c] sm:$0x1]
    %v1396 = vld [vmem:[%s1167 + $0x50] sm:$0xf]
    %v1397 = vld [vmem:[%s1167 + $0x54] sm:$0x1]
    %v1398 = vld [vmem:[%s1167 + $0x58] sm:$0xf]
    %v1399 = vld [vmem:[%s1167 + $0x5c] sm:$0x1]
    %v1400 = vld [vmem:[%s1167 + $0x60] sm:$0xf]
    %v1401 = vld [vmem:[%s1167 + $0x64] sm:$0x1]
    %v1402 = vld [vmem:[%s1167 + $0x68] sm:$0xf]
    %v1403 = vld [vmem:[%s1167 + $0x6c] sm:$0x1]
    %v1404 = vld [vmem:[%s1167 + $0x70] sm:$0xf]
    %v1405 = vld [vmem:[%s1167 + $0x74] sm:$0x1]
    %v1406 = vld [vmem:[%s1167 + $0x78] sm:$0xf]
    %v1407 = vld [vmem:[%s1167 + $0x7c] sm:$0x1]
    %v1408 = vld [vmem:[%s1167 + $0x80] sm:$0xf]
    %v1409 = vld [vmem:[%s1167 + $0x84] sm:$0x1]
    %v1411 = vshrl.u32 %v1378, 16
    %v1413 = vrot.slane %v1411, 4
    %v1414 = vshll.u32 %v1378, 16
    %v1416 = vrot.slane %v1414, 5
    %v1417 = vor.u32 %v1413, %v1416
    %v1418 = vrot.slane %v1417, 4
    %v1420 = vshll.u32 %v1379, 16
    %v1422 = vrot.slane %v1420, 5
    %v1423 = vsel %vm604, %v1418, %v1422
    %v1425 = vshrl.u32 %v1380, 16
    %v1427 = vrot.slane %v1425, 4
    %v1428 = vshll.u32 %v1380, 16
    %v1430 = vrot.slane %v1428, 5
    %v1431 = vor.u32 %v1427, %v1430
    %v1432 = vrot.slane %v1431, 4
    %v1434 = vshll.u32 %v1381, 16
    %v1436 = vrot.slane %v1434, 5
    %v1437 = vsel %vm604, %v1432, %v1436
    %v1439 = vshrl.u32 %v1382, 16
    %v1441 = vrot.slane %v1439, 4
    %v1442 = vshll.u32 %v1382, 16
    %v1444 = vrot.slane %v1442, 5
    %v1445 = vor.u32 %v1441, %v1444
    %v1446 = vrot.slane %v1445, 4
    %v1448 = vshll.u32 %v1383, 16
    %v1450 = vrot.slane %v1448, 5
    %v1451 = vsel %vm604, %v1446, %v1450
    %v1453 = vshrl.u32 %v1384, 16
    %v1455 = vrot.slane %v1453, 4
    %v1456 = vshll.u32 %v1384, 16
    %v1458 = vrot.slane %v1456, 5
    %v1459 = vor.u32 %v1455, %v1458
    %v1460 = vrot.slane %v1459, 4
    %v1462 = vshll.u32 %v1385, 16
    %v1464 = vrot.slane %v1462, 5
    %v1465 = vsel %vm604, %v1460, %v1464
    %v1467 = vshrl.u32 %v1386, 16
    %v1469 = vrot.slane %v1467, 4
    %v1470 = vshll.u32 %v1386, 16
    %v1472 = vrot.slane %v1470, 5
    %v1473 = vor.u32 %v1469, %v1472
    %v1474 = vrot.slane %v1473, 4
    %v1476 = vshll.u32 %v1387, 16
    %v1478 = vrot.slane %v1476, 5
    %v1479 = vsel %vm604, %v1474, %v1478
    %v1481 = vshrl.u32 %v1388, 16
    %v1483 = vrot.slane %v1481, 4
    %v1484 = vshll.u32 %v1388, 16
    %v1486 = vrot.slane %v1484, 5
    %v1487 = vor.u32 %v1483, %v1486
    %v1488 = vrot.slane %v1487, 4
    %v1490 = vshll.u32 %v1389, 16
    %v1492 = vrot.slane %v1490, 5
    %v1493 = vsel %vm604, %v1488, %v1492
    %v1495 = vshrl.u32 %v1390, 16
    %v1497 = vrot.slane %v1495, 4
    %v1498 = vshll.u32 %v1390, 16
    %v1500 = vrot.slane %v1498, 5
    %v1501 = vor.u32 %v1497, %v1500
    %v1502 = vrot.slane %v1501, 4
    %v1504 = vshll.u32 %v1391, 16
    %v1506 = vrot.slane %v1504, 5
    %v1507 = vsel %vm604, %v1502, %v1506
    %v1509 = vshrl.u32 %v1392, 16
    %v1511 = vrot.slane %v1509, 4
    %v1512 = vshll.u32 %v1392, 16
    %v1514 = vrot.slane %v1512, 5
    %v1515 = vor.u32 %v1511, %v1514
    %v1516 = vrot.slane %v1515, 4
    %v1518 = vshll.u32 %v1393, 16
    %v1520 = vrot.slane %v1518, 5
    %v1521 = vsel %vm604, %v1516, %v1520
    %v1523 = vshrl.u32 %v1394, 16
    %v1525 = vrot.slane %v1523, 4
    %v1526 = vshll.u32 %v1394, 16
    %v1528 = vrot.slane %v1526, 5
    %v1529 = vor.u32 %v1525, %v1528
    %v1530 = vrot.slane %v1529, 4
    %v1532 = vshll.u32 %v1395, 16
    %v1534 = vrot.slane %v1532, 5
    %v1535 = vsel %vm604, %v1530, %v1534
    %v1537 = vshrl.u32 %v1396, 16
    %v1539 = vrot.slane %v1537, 4
    %v1540 = vshll.u32 %v1396, 16
    %v1542 = vrot.slane %v1540, 5
    %v1543 = vor.u32 %v1539, %v1542
    %v1544 = vrot.slane %v1543, 4
    %v1546 = vshll.u32 %v1397, 16
    %v1548 = vrot.slane %v1546, 5
    %v1549 = vsel %vm604, %v1544, %v1548
    %v1551 = vshrl.u32 %v1398, 16
    %v1553 = vrot.slane %v1551, 4
    %v1554 = vshll.u32 %v1398, 16
    %v1556 = vrot.slane %v1554, 5
    %v1557 = vor.u32 %v1553, %v1556
    %v1558 = vrot.slane %v1557, 4
    %v1560 = vshll.u32 %v1399, 16
    %v1562 = vrot.slane %v1560, 5
    %v1563 = vsel %vm604, %v1558, %v1562
    %v1565 = vshrl.u32 %v1400, 16
    %v1567 = vrot.slane %v1565, 4
    %v1568 = vshll.u32 %v1400, 16
    %v1570 = vrot.slane %v1568, 5
    %v1571 = vor.u32 %v1567, %v1570
    %v1572 = vrot.slane %v1571, 4
    %v1574 = vshll.u32 %v1401, 16
    %v1576 = vrot.slane %v1574, 5
    %v1577 = vsel %vm604, %v1572, %v1576
    %v1579 = vshrl.u32 %v1402, 16
    %v1581 = vrot.slane %v1579, 4
    %v1582 = vshll.u32 %v1402, 16
    %v1584 = vrot.slane %v1582, 5
    %v1585 = vor.u32 %v1581, %v1584
    %v1586 = vrot.slane %v1585, 4
    %v1588 = vshll.u32 %v1403, 16
    %v1590 = vrot.slane %v1588, 5
    %v1591 = vsel %vm604, %v1586, %v1590
    %v1593 = vshrl.u32 %v1404, 16
    %v1595 = vrot.slane %v1593, 4
    %v1596 = vshll.u32 %v1404, 16
    %v1598 = vrot.slane %v1596, 5
    %v1599 = vor.u32 %v1595, %v1598
    %v1600 = vrot.slane %v1599, 4
    %v1602 = vshll.u32 %v1405, 16
    %v1604 = vrot.slane %v1602, 5
    %v1605 = vsel %vm604, %v1600, %v1604
    %v1607 = vshrl.u32 %v1406, 16
    %v1609 = vrot.slane %v1607, 4
    %v1610 = vshll.u32 %v1406, 16
    %v1612 = vrot.slane %v1610, 5
    %v1613 = vor.u32 %v1609, %v1612
    %v1614 = vrot.slane %v1613, 4
    %v1616 = vshll.u32 %v1407, 16
    %v1618 = vrot.slane %v1616, 5
    %v1619 = vsel %vm604, %v1614, %v1618
    %v1621 = vshrl.u32 %v1408, 16
    %v1623 = vrot.slane %v1621, 4
    %v1624 = vshll.u32 %v1408, 16
    %v1626 = vrot.slane %v1624, 5
    %v1627 = vor.u32 %v1623, %v1626
    %v1628 = vrot.slane %v1627, 4
    %v1630 = vshll.u32 %v1409, 16
    %v1632 = vrot.slane %v1630, 5
    %v1633 = vsel %vm604, %v1628, %v1632
    %s1634 = scalar_lea.vmem %s2, 48
    %v1635 = vld [vmem:[%s1634] sm:$0xf]
    %v1636 = vld [vmem:[%s1634 + $0x4] sm:$0xf]
    %v1637 = vld [vmem:[%s1634 + $0x8] sm:$0xf]
    %v1638 = vld [vmem:[%s1634 + $0xc] sm:$0xf]
    %v1639 = vunpack.c.l.b16 %v1423
    %v1640 = vunpack.c.l.b16 %v1437
    %v1641 = vunpack.c.l.b16 %v1451
    %v1642 = vunpack.c.l.b16 %v1465
    %v1643 = vunpack.c.l.b16 %v1479
    %v1644 = vunpack.c.l.b16 %v1493
    %v1645 = vunpack.c.l.b16 %v1507
    %v1646 = vunpack.c.l.b16 %v1521
    %v1647 = vunpack.c.l.b16 %v1535
    %v1648 = vunpack.c.l.b16 %v1549
    %v1649 = vunpack.c.l.b16 %v1563
    %v1650 = vunpack.c.l.b16 %v1577
    %v1651 = vunpack.c.l.b16 %v1591
    %v1652 = vunpack.c.l.b16 %v1605
    %v1653 = vunpack.c.l.b16 %v1619
    %v1654 = vunpack.c.l.b16 %v1633
    %v1655 = vpack.c.b16 %v1640, %v1639
    %v1656 = vpack.c.b16 %v1642, %v1641
    %v1657 = vpack.c.b16 %v1644, %v1643
    %v1658 = vpack.c.b16 %v1646, %v1645
    %v1659 = vpack.c.b16 %v1648, %v1647
    %v1660 = vpack.c.b16 %v1650, %v1649
    %v1661 = vpack.c.b16 %v1652, %v1651
    %v1662 = vpack.c.b16 %v1654, %v1653
    %v1667 = vunpack.c.l.b16 %v1635
    %v1668 = vunpack.c.l.b16 %v1636
    %v1669 = vunpack.c.l.b16 %v1637
    %v1670 = vunpack.c.l.b16 %v1638
    %v1671 = vpack.c.b16 %v1668, %v1667
    %v1672 = vpack.c.b16 %v1670, %v1669
    %v1676 = vsel %vm870, %v1655, 0
    %v1679 = vsel %vm870, %v1656, 0
    %v1682 = vsel %vm870, %v1657, 0
    %v1685 = vsel %vm870, %v1658, 0
    %v1688 = vsel %vm870, %v1659, 0
    %v1691 = vsel %vm870, %v1660, 0
    %v1694 = vsel %vm870, %v1661, 0
    %v1697 = vsel %vm870, %v1662, 0
    %1699 = vmatprep.subr.bf16.mxu0 0
    %1700 = vmatpush1.bf16.msra.mxu0 %v1671
    %1701 = vmatprep.subr.bf16.mxu0 0
    %1702 = vmatpush1.bf16.msra.mxu0 %v1672
    %1703 = vmatprep.subr.bf16.mxu0 0
    %1704 = vmatpush1.bf16.msra.mxu0 0
    %1705 = vmatprep.subr.bf16.mxu0 0
    %1706 = vmatpush1.bf16.msra.mxu0 0
    %1707 = vmatprep.subr.bf16.mxu0 0
    %1708 = vmatpush1.bf16.msra.mxu0 0
    %1709 = vmatprep.subr.bf16.mxu0 0
    %1710 = vmatpush1.bf16.msra.mxu0 0
    %1711 = vmatprep.subr.bf16.mxu0 0
    %1712 = vmatpush1.bf16.msra.mxu0 0
    %1713 = vmatprep.subr.bf16.mxu0 0
    %1714 = vmatpush1.bf16.msra.mxu0 0
    %1715 = vmatprep.subr.bf16.mxu0 0
    %1716 = vmatpush1.bf16.msra.mxu0 0
    %1717 = vmatprep.subr.bf16.mxu0 0
    %1718 = vmatpush1.bf16.msra.mxu0 0
    %1719 = vmatprep.subr.bf16.mxu0 0
    %1720 = vmatpush1.bf16.msra.mxu0 0
    %1721 = vmatprep.subr.bf16.mxu0 0
    %1722 = vmatpush1.bf16.msra.mxu0 0
    %1723 = vmatprep.subr.bf16.mxu0 0
    %1724 = vmatpush1.bf16.msra.mxu0 0
    %1725 = vmatprep.subr.bf16.mxu0 0
    %1726 = vmatpush1.bf16.msra.mxu0 0
    %1727 = vmatprep.subr.bf16.mxu0 0
    %1728 = vmatpush1.bf16.msra.mxu0 0
    %1729 = vmatprep.subr.bf16.mxu0 0
    %1730 = vmatpush1.bf16.msra.mxu0 0
    %1731 = vmatprep.mubr.bf16.mxu0 0
    %1732 = vmatmul.mubr.bf16.gmra.mrb[0].mxu0 %v1676
    %v1733 = vpop.f32.mrb[0].mxu0
    %v1734 = vadd.f32 0.0, %v1733
    %v1735 = vpop.f32.mrb[0].mxu0
    %v1736 = vpop.f32.mrb[0].mxu0
    %v1737 = vadd.f32 0.0, %v1736
    %v1738 = vpop.f32.mrb[0].mxu0
    %1739 = vmatprep.mubr.bf16.mxu0 0
    %1740 = vmatmul.mubr.bf16.gmra.mrb[0].mxu0 %v1679
    %v1741 = vpop.f32.mrb[0].mxu0
    %v1742 = vadd.f32 0.0, %v1741
    %v1743 = vpop.f32.mrb[0].mxu0
    %v1744 = vpop.f32.mrb[0].mxu0
    %v1745 = vadd.f32 0.0, %v1744
    %v1746 = vpop.f32.mrb[0].mxu0
    %1747 = vmatprep.mubr.bf16.mxu0 0
    %1748 = vmatmul.mubr.bf16.gmra.mrb[0].mxu0 %v1682
    %v1749 = vpop.f32.mrb[0].mxu0
    %v1750 = vadd.f32 0.0, %v1749
    %v1751 = vpop.f32.mrb[0].mxu0
    %v1752 = vpop.f32.mrb[0].mxu0
    %v1753 = vadd.f32 0.0, %v1752
    %v1754 = vpop.f32.mrb[0].mxu0
    %1755 = vmatprep.mubr.bf16.mxu0 0
    %1756 = vmatmul.mubr.bf16.gmra.mrb[0].mxu0 %v1685
    %v1757 = vpop.f32.mrb[0].mxu0
    %v1758 = vadd.f32 0.0, %v1757
    %v1759 = vpop.f32.mrb[0].mxu0
    %v1760 = vpop.f32.mrb[0].mxu0
    %v1761 = vadd.f32 0.0, %v1760
    %v1762 = vpop.f32.mrb[0].mxu0
    %1763 = vmatprep.mubr.bf16.mxu0 0
    %1764 = vmatmul.mubr.bf16.gmra.mrb[0].mxu0 %v1688
    %v1765 = vpop.f32.mrb[0].mxu0
    %v1766 = vadd.f32 0.0, %v1765
    %v1767 = vpop.f32.mrb[0].mxu0
    %v1768 = vpop.f32.mrb[0].mxu0
    %v1769 = vadd.f32 0.0, %v1768
    %v1770 = vpop.f32.mrb[0].mxu0
    %1771 = vmatprep.mubr.bf16.mxu0 0
    %1772 = vmatmul.mubr.bf16.gmra.mrb[0].mxu0 %v1691
    %v1773 = vpop.f32.mrb[0].mxu0
    %v1774 = vadd.f32 0.0, %v1773
    %v1775 = vpop.f32.mrb[0].mxu0
    %v1776 = vpop.f32.mrb[0].mxu0
    %v1777 = vadd.f32 0.0, %v1776
    %v1778 = vpop.f32.mrb[0].mxu0
    %1779 = vmatprep.mubr.bf16.mxu0 0
    %1780 = vmatmul.mubr.bf16.gmra.mrb[0].mxu0 %v1694
    %v1781 = vpop.f32.mrb[0].mxu0
    %v1782 = vadd.f32 0.0, %v1781
    %v1783 = vpop.f32.mrb[0].mxu0
    %v1784 = vpop.f32.mrb[0].mxu0
    %v1785 = vadd.f32 0.0, %v1784
    %v1786 = vpop.f32.mrb[0].mxu0
    %1787 = vmatprep.mubr.bf16.mxu0 0
    %1788 = vmatmul.mubr.bf16.gmra.mrb[0].mxu0 %v1697
    %v1789 = vpop.f32.mrb[0].mxu0
    %v1790 = vadd.f32 0.0, %v1789
    %v1791 = vpop.f32.mrb[0].mxu0
    %v1792 = vpop.f32.mrb[0].mxu0
    %v1793 = vadd.f32 0.0, %v1792
    %v1794 = vpop.f32.mrb[0].mxu0
    %1795 = vdwg.mxu0
    %v1796 = vadd.f32 %v1362, %v1734
    %v1797 = vadd.f32 %v1363, %v1737
    %v1798 = vadd.f32 %v1364, %v1742
    %v1799 = vadd.f32 %v1365, %v1745
    %v1800 = vadd.f32 %v1366, %v1750
    %v1801 = vadd.f32 %v1367, %v1753
    %v1802 = vadd.f32 %v1368, %v1758
    %v1803 = vadd.f32 %v1369, %v1761
    %v1804 = vadd.f32 %v1370, %v1766
    %v1805 = vadd.f32 %v1371, %v1769
    %v1806 = vadd.f32 %v1372, %v1774
    %v1807 = vadd.f32 %v1373, %v1777
    %v1808 = vadd.f32 %v1374, %v1782
    %v1809 = vadd.f32 %v1375, %v1785
    %v1810 = vadd.f32 %v1376, %v1790
    %v1811 = vadd.f32 %v1377, %v1793
    %p1812 = scmp.eq.s32.totalorder 0, 0
    // Predicated region
    $region18: #{tpu_custom_call.1} parent=1 // pred_check
      %p1813 = pneg %p1812
    $region19: #{tpu_custom_call.1} parent=1 // pred_check_branch
      %1815 = sbr.rel (%p1813) target = $region21
    $region20: #{tpu_custom_call.1} parent=1 // pred_region
      %vm1816 = vcmask 130048
      %1817 = vst.msk [vmem:[#allocation3] sm:$0xff] %vm1816, %v1796
      %1818 = vst.msk [vmem:[#allocation3 + $0x8] sm:$0xff] %vm1816, %v1797
      %1819 = vst.msk [vmem:[#allocation3 + $0x10] sm:$0xff] %vm1816, %v1798
      %1820 = vst.msk [vmem:[#allocation3 + $0x18] sm:$0xff] %vm1816, %v1799
      %1821 = vst.msk [vmem:[#allocation3 + $0x20] sm:$0xff] %vm1816, %v1800
      %1822 = vst.msk [vmem:[#allocation3 + $0x28] sm:$0xff] %vm1816, %v1801
      %1823 = vst.msk [vmem:[#allocation3 + $0x30] sm:$0xff] %vm1816, %v1802
      %1824 = vst.msk [vmem:[#allocation3 + $0x38] sm:$0xff] %vm1816, %v1803
      %1825 = vst.msk [vmem:[#allocation3 + $0x40] sm:$0xff] %vm1816, %v1804
      %1826 = vst.msk [vmem:[#allocation3 + $0x48] sm:$0xff] %vm1816, %v1805
      %1827 = vst.msk [vmem:[#allocation3 + $0x50] sm:$0xff] %vm1816, %v1806
      %1828 = vst.msk [vmem:[#allocation3 + $0x58] sm:$0xff] %vm1816, %v1807
      %1829 = vst.msk [vmem:[#allocation3 + $0x60] sm:$0xff] %vm1816, %v1808
      %1830 = vst.msk [vmem:[#allocation3 + $0x68] sm:$0xff] %vm1816, %v1809
      %1831 = vst.msk [vmem:[#allocation3 + $0x70] sm:$0xff] %vm1816, %v1810
      %1832 = vst.msk [vmem:[#allocation3 + $0x78] sm:$0xff] %vm1816, %v1811
    $region21: #{tpu_custom_call.1} parent=1 // pred_fallthru
      _
    %p1833 = scmp.ne.s32.totalorder 0, 0
    // Predicated region
    $region22: #{tpu_custom_call.1} parent=1 // pred_check
      %p1834 = pneg %p1833
    $region23: #{tpu_custom_call.1} parent=1 // pred_check_branch
      %1836 = sbr.rel (%p1834) target = $region25
    $region24: #{tpu_custom_call.1} parent=1 // pred_region
      %v1837 = vld [vmem:[#allocation3] sm:$0xff]
      %v1838 = vld [vmem:[#allocation3 + $0x8] sm:$0xff]
      %v1839 = vld [vmem:[#allocation3 + $0x10] sm:$0xff]
      %v1840 = vld [vmem:[#allocation3 + $0x18] sm:$0xff]
      %v1841 = vld [vmem:[#allocation3 + $0x20] sm:$0xff]
      %v1842 = vld [vmem:[#allocation3 + $0x28] sm:$0xff]
      %v1843 = vld [vmem:[#allocation3 + $0x30] sm:$0xff]
      %v1844 = vld [vmem:[#allocation3 + $0x38] sm:$0xff]
      %v1845 = vld [vmem:[#allocation3 + $0x40] sm:$0xff]
      %v1846 = vld [vmem:[#allocation3 + $0x48] sm:$0xff]
      %v1847 = vld [vmem:[#allocation3 + $0x50] sm:$0xff]
      %v1848 = vld [vmem:[#allocation3 + $0x58] sm:$0xff]
      %v1849 = vld [vmem:[#allocation3 + $0x60] sm:$0xff]
      %v1850 = vld [vmem:[#allocation3 + $0x68] sm:$0xff]
      %v1851 = vld [vmem:[#allocation3 + $0x70] sm:$0xff]
      %v1852 = vld [vmem:[#allocation3 + $0x78] sm:$0xff]
      %v1853 = vadd.f32 %v1837, %v1796
      %v1854 = vadd.f32 %v1838, %v1797
      %v1855 = vadd.f32 %v1839, %v1798
      %v1856 = vadd.f32 %v1840, %v1799
      %v1857 = vadd.f32 %v1841, %v1800
      %v1858 = vadd.f32 %v1842, %v1801
      %v1859 = vadd.f32 %v1843, %v1802
      %v1860 = vadd.f32 %v1844, %v1803
      %v1861 = vadd.f32 %v1845, %v1804
      %v1862 = vadd.f32 %v1846, %v1805
      %v1863 = vadd.f32 %v1847, %v1806
      %v1864 = vadd.f32 %v1848, %v1807
      %v1865 = vadd.f32 %v1849, %v1808
      %v1866 = vadd.f32 %v1850, %v1809
      %v1867 = vadd.f32 %v1851, %v1810
      %v1868 = vadd.f32 %v1852, %v1811
      %vm1869 = vcmask 130048
      %1870 = vst.msk [vmem:[#allocation3] sm:$0xff] %vm1869, %v1853
      %1871 = vst.msk [vmem:[#allocation3 + $0x8] sm:$0xff] %vm1869, %v1854
      %1872 = vst.msk [vmem:[#allocation3 + $0x10] sm:$0xff] %vm1869, %v1855
      %1873 = vst.msk [vmem:[#allocation3 + $0x18] sm:$0xff] %vm1869, %v1856
      %1874 = vst.msk [vmem:[#allocation3 + $0x20] sm:$0xff] %vm1869, %v1857
      %1875 = vst.msk [vmem:[#allocation3 + $0x28] sm:$0xff] %vm1869, %v1858
      %1876 = vst.msk [vmem:[#allocation3 + $0x30] sm:$0xff] %vm1869, %v1859
      %1877 = vst.msk [vmem:[#allocation3 + $0x38] sm:$0xff] %vm1869, %v1860
      %1878 = vst.msk [vmem:[#allocation3 + $0x40] sm:$0xff] %vm1869, %v1861
      %1879 = vst.msk [vmem:[#allocation3 + $0x48] sm:$0xff] %vm1869, %v1862
      %1880 = vst.msk [vmem:[#allocation3 + $0x50] sm:$0xff] %vm1869, %v1863
      %1881 = vst.msk [vmem:[#allocation3 + $0x58] sm:$0xff] %vm1869, %v1864
      %1882 = vst.msk [vmem:[#allocation3 + $0x60] sm:$0xff] %vm1869, %v1865
      %1883 = vst.msk [vmem:[#allocation3 + $0x68] sm:$0xff] %vm1869, %v1866
      %1884 = vst.msk [vmem:[#allocation3 + $0x70] sm:$0xff] %vm1869, %v1867
      %1885 = vst.msk [vmem:[#allocation3 + $0x78] sm:$0xff] %vm1869, %v1868
    $region25: #{tpu_custom_call.1} parent=1 // pred_fallthru
      _
    // Predicated region
    $region26: #{tpu_custom_call.1} parent=1 // pred_check
      %p1886 = pneg %p1812
    $region27: #{tpu_custom_call.1} parent=1 // pred_check_branch
      %1888 = sbr.rel (%p1886) target = $region29
    $region28: #{tpu_custom_call.1} parent=1 // pred_region
      %v1889 = vld [vmem:[#allocation3] sm:$0xff]
      %v1890 = vld [vmem:[#allocation3 + $0x8] sm:$0xff]
      %v1891 = vld [vmem:[#allocation3 + $0x10] sm:$0xff]
      %v1892 = vld [vmem:[#allocation3 + $0x18] sm:$0xff]
      %v1893 = vld [vmem:[#allocation3 + $0x20] sm:$0xff]
      %v1894 = vld [vmem:[#allocation3 + $0x28] sm:$0xff]
      %v1895 = vld [vmem:[#allocation3 + $0x30] sm:$0xff]
      %v1896 = vld [vmem:[#allocation3 + $0x38] sm:$0xff]
      %v1897 = vld [vmem:[#allocation3 + $0x40] sm:$0xff]
      %v1898 = vld [vmem:[#allocation3 + $0x48] sm:$0xff]
      %v1899 = vld [vmem:[#allocation3 + $0x50] sm:$0xff]
      %v1900 = vld [vmem:[#allocation3 + $0x58] sm:$0xff]
      %v1901 = vld [vmem:[#allocation3 + $0x60] sm:$0xff]
      %v1902 = vld [vmem:[#allocation3 + $0x68] sm:$0xff]
      %v1903 = vld [vmem:[#allocation3 + $0x70] sm:$0xff]
      %v1904 = vld [vmem:[#allocation3 + $0x78] sm:$0xff]
      %v1905 = vpack.c.bf16 %v1889, %v1889
      %v1906 = vpack.c.bf16 %v1890, %v1890
      %v1907 = vpack.c.bf16 %v1891, %v1891
      %v1908 = vpack.c.bf16 %v1892, %v1892
      %v1909 = vpack.c.bf16 %v1893, %v1893
      %v1910 = vpack.c.bf16 %v1894, %v1894
      %v1911 = vpack.c.bf16 %v1895, %v1895
      %v1912 = vpack.c.bf16 %v1896, %v1896
      %v1913 = vpack.c.bf16 %v1897, %v1897
      %v1914 = vpack.c.bf16 %v1898, %v1898
      %v1915 = vpack.c.bf16 %v1899, %v1899
      %v1916 = vpack.c.bf16 %v1900, %v1900
      %v1917 = vpack.c.bf16 %v1901, %v1901
      %v1918 = vpack.c.bf16 %v1902, %v1902
      %v1919 = vpack.c.bf16 %v1903, %v1903
      %v1920 = vpack.c.bf16 %v1904, %v1904
      %vm1921 = vcmask 125952
      %1922 = vst.msk [vmem:[#allocation4] sm:$0xf] %vm1921, %v1905
      %1923 = vst.msk [vmem:[#allocation4 + $0x4] sm:$0xf] %vm1921, %v1906
      %1924 = vst.msk [vmem:[#allocation4 + $0x8] sm:$0xf] %vm1921, %v1907
      %1925 = vst.msk [vmem:[#allocation4 + $0xc] sm:$0xf] %vm1921, %v1908
      %1926 = vst.msk [vmem:[#allocation4 + $0x10] sm:$0xf] %vm1921, %v1909
      %1927 = vst.msk [vmem:[#allocation4 + $0x14] sm:$0xf] %vm1921, %v1910
      %1928 = vst.msk [vmem:[#allocation4 + $0x18] sm:$0xf] %vm1921, %v1911
      %1929 = vst.msk [vmem:[#allocation4 + $0x1c] sm:$0xf] %vm1921, %v1912
      %1930 = vst.msk [vmem:[#allocation4 + $0x20] sm:$0xf] %vm1921, %v1913
      %1931 = vst.msk [vmem:[#allocation4 + $0x24] sm:$0xf] %vm1921, %v1914
      %1932 = vst.msk [vmem:[#allocation4 + $0x28] sm:$0xf] %vm1921, %v1915
      %1933 = vst.msk [vmem:[#allocation4 + $0x2c] sm:$0xf] %vm1921, %v1916
      %1934 = vst.msk [vmem:[#allocation4 + $0x30] sm:$0xf] %vm1921, %v1917
      %1935 = vst.msk [vmem:[#allocation4 + $0x34] sm:$0xf] %vm1921, %v1918
      %1936 = vst.msk [vmem:[#allocation4 + $0x38] sm:$0xf] %vm1921, %v1919
      %1937 = vst.msk [vmem:[#allocation4 + $0x3c] sm:$0xf] %vm1921, %v1920
      %v1938 = vld [vmem:[#allocation3] sm:$0xff]
      %v1939 = vld [vmem:[#allocation3 + $0x8] sm:$0xff]
      %v1940 = vld [vmem:[#allocation3 + $0x10] sm:$0xff]
      %v1941 = vld [vmem:[#allocation3 + $0x18] sm:$0xff]
      %v1942 = vld [vmem:[#allocation3 + $0x20] sm:$0xff]
      %v1943 = vld [vmem:[#allocation3 + $0x28] sm:$0xff]
      %v1944 = vld [vmem:[#allocation3 + $0x30] sm:$0xff]
      %v1945 = vld [vmem:[#allocation3 + $0x38] sm:$0xff]
      %v1946 = vld [vmem:[#allocation3 + $0x40] sm:$0xff]
      %v1947 = vld [vmem:[#allocation3 + $0x48] sm:$0xff]
      %v1948 = vld [vmem:[#allocation3 + $0x50] sm:$0xff]
      %v1949 = vld [vmem:[#allocation3 + $0x58] sm:$0xff]
      %v1950 = vld [vmem:[#allocation3 + $0x60] sm:$0xff]
      %v1951 = vld [vmem:[#allocation3 + $0x68] sm:$0xff]
      %v1952 = vld [vmem:[#allocation3 + $0x70] sm:$0xff]
      %v1953 = vld [vmem:[#allocation3 + $0x78] sm:$0xff]
      %vm1954 = vcmask 130048
      %v1955 = vsel %vm1954, %v1938, 0.0
      %v1956 = vsel %vm1954, %v1939, 0.0
      %v1957 = vadd.f32 %v1955, %v1956
      %v1958 = vsel %vm1954, %v1940, 0.0
      %v1959 = vadd.f32 %v1957, %v1958
      %v1960 = vsel %vm1954, %v1941, 0.0
      %v1961 = vadd.f32 %v1959, %v1960
      %v1962 = vsel %vm1954, %v1942, 0.0
      %v1963 = vadd.f32 %v1961, %v1962
      %v1964 = vsel %vm1954, %v1943, 0.0
      %v1965 = vadd.f32 %v1963, %v1964
      %v1966 = vsel %vm1954, %v1944, 0.0
      %v1967 = vadd.f32 %v1965, %v1966
      %v1968 = vsel %vm1954, %v1945, 0.0
      %v1969 = vadd.f32 %v1967, %v1968
      %v1970 = vsel %vm1954, %v1946, 0.0
      %v1971 = vadd.f32 %v1969, %v1970
      %v1972 = vsel %vm1954, %v1947, 0.0
      %v1973 = vadd.f32 %v1971, %v1972
      %v1974 = vsel %vm1954, %v1948, 0.0
      %v1975 = vadd.f32 %v1973, %v1974
      %v1976 = vsel %vm1954, %v1949, 0.0
      %v1977 = vadd.f32 %v1975, %v1976
      %v1978 = vsel %vm1954, %v1950, 0.0
      %v1979 = vadd.f32 %v1977, %v1978
      %v1980 = vsel %vm1954, %v1951, 0.0
      %v1981 = vadd.f32 %v1979, %v1980
      %v1982 = vsel %vm1954, %v1952, 0.0
      %v1983 = vadd.f32 %v1981, %v1982
      %v1984 = vsel %vm1954, %v1953, 0.0
      %v1985 = vadd.f32 %v1983, %v1984
      %v1986 = vrot.slane %v1985, 4
      %v1987 = vadd.f32 %v1985, %v1986
      %v1988 = vrot.slane %v1987, 2
      %v1989 = vadd.f32 %v1987, %v1988
      %v1990 = vrot.slane %v1989, 1
      %v1991 = vadd.f32 %v1989, %v1990
      %v1992 = vmul.f32 %v1938, %v1938
      %v1993 = vmul.f32 %v1939, %v1939
      %v1994 = vmul.f32 %v1940, %v1940
      %v1995 = vmul.f32 %v1941, %v1941
      %v1996 = vmul.f32 %v1942, %v1942
      %v1997 = vmul.f32 %v1943, %v1943
      %v1998 = vmul.f32 %v1944, %v1944
      %v1999 = vmul.f32 %v1945, %v1945
      %v2000 = vmul.f32 %v1946, %v1946
      %v2001 = vmul.f32 %v1947, %v1947
      %v2002 = vmul.f32 %v1948, %v1948
      %v2003 = vmul.f32 %v1949, %v1949
      %v2004 = vmul.f32 %v1950, %v1950
      %v2005 = vmul.f32 %v1951, %v1951
      %v2006 = vmul.f32 %v1952, %v1952
      %v2007 = vmul.f32 %v1953, %v1953
      %v2008 = vsel %vm1954, %v1992, 0.0
      %v2009 = vsel %vm1954, %v1993, 0.0
      %v2010 = vadd.f32 %v2008, %v2009
      %v2011 = vsel %vm1954, %v1994, 0.0
      %v2012 = vadd.f32 %v2010, %v2011
      %v2013 = vsel %vm1954, %v1995, 0.0
      %v2014 = vadd.f32 %v2012, %v2013
      %v2015 = vsel %vm1954, %v1996, 0.0
      %v2016 = vadd.f32 %v2014, %v2015
      %v2017 = vsel %vm1954, %v1997, 0.0
      %v2018 = vadd.f32 %v2016, %v2017
      %v2019 = vsel %vm1954, %v1998, 0.0
      %v2020 = vadd.f32 %v2018, %v2019
      %v2021 = vsel %vm1954, %v1999, 0.0
      %v2022 = vadd.f32 %v2020, %v2021
      %v2023 = vsel %vm1954, %v2000, 0.0
      %v2024 = vadd.f32 %v2022, %v2023
      %v2025 = vsel %vm1954, %v2001, 0.0
      %v2026 = vadd.f32 %v2024, %v2025
      %v2027 = vsel %vm1954, %v2002, 0.0
      %v2028 = vadd.f32 %v2026, %v2027
      %v2029 = vsel %vm1954, %v2003, 0.0
      %v2030 = vadd.f32 %v2028, %v2029
      %v2031 = vsel %vm1954, %v2004, 0.0
      %v2032 = vadd.f32 %v2030, %v2031
      %v2033 = vsel %vm1954, %v2005, 0.0
      %v2034 = vadd.f32 %v2032, %v2033
      %v2035 = vsel %vm1954, %v2006, 0.0
      %v2036 = vadd.f32 %v2034, %v2035
      %v2037 = vsel %vm1954, %v2007, 0.0
      %v2038 = vadd.f32 %v2036, %v2037
      %v2039 = vrot.slane %v2038, 4
      %v2040 = vadd.f32 %v2038, %v2039
      %v2041 = vrot.slane %v2040, 2
      %v2042 = vadd.f32 %v2040, %v2041
      %v2043 = vrot.slane %v2042, 1
      %v2044 = vadd.f32 %v2042, %v2043
      %vm2045 = vcmask 1040384
      %v2046 = vsel %vm2045, %v1991, %v2044
      %vm2047 = vcmask 123904
      %2048 = vst.msk [vmem:[#allocation6] sm:$0x3] %vm2047, %v2046
    $region29: #{tpu_custom_call.1} parent=1 // pred_fallthru
      _
    // Predicated region
    $region30: #{tpu_custom_call.1} parent=1 // pred_check
      _
    $region31: #{tpu_custom_call.1} parent=1 // pred_check_branch
      %2050 = sbr.rel (0) target = $region33
    $region32: #{tpu_custom_call.1} parent=1 // pred_region
      %s2052 = ssub.s32 1024, 1024
      %2053 = vsyncadd [#allocation5], %s2052
      %s2054 = sshll.u32 [#allocation4], 4
      %s2055 = int_to_ptr.vmem [resolvable:$true] %s2054
      %2060 = dma.vmem_to_hbm [thread:$0]  %s2055, 1024, %s3, [#allocation5], 64, 64, 4
    $region33: #{tpu_custom_call.1} parent=1 // pred_fallthru
      _
    // Predicated region
    $region34: #{tpu_custom_call.1} parent=1 // pred_check
      _
    $region35: #{tpu_custom_call.1} parent=1 // pred_check_branch
      %2062 = sbr.rel (0) target = $region37
    $region36: #{tpu_custom_call.1} parent=1 // pred_region
      %s2064 = ssub.s32 32, 32
      %2065 = vsyncadd [#allocation7], %s2064
      %s2067 = sshll.u32 [#allocation6], 4
      %s2068 = int_to_ptr.vmem [resolvable:$true] %s2067
      %2070 = dma.vmem_to_hbm [thread:$0]  %s2068, 32, %s4, [#allocation7]
    $region37: #{tpu_custom_call.1} parent=1 // pred_fallthru
      _
    // Predicated region
    $region38: #{tpu_custom_call.1} parent=1 // pred_check
      _
    $region39: #{tpu_custom_call.1} parent=1 // pred_check_branch
      %2072 = sbr.rel (0) target = $region41
    $region40: #{tpu_custom_call.1} parent=1 // pred_region
      %2073 = dma.done [#allocation5], 1024
    $region41: #{tpu_custom_call.1} parent=1 // pred_fallthru
      _
    // Predicated region
    $region42: #{tpu_custom_call.1} parent=1 // pred_check
      _
    $region43: #{tpu_custom_call.1} parent=1 // pred_check_branch
      %2075 = sbr.rel (0) target = $region45
    $region44: #{tpu_custom_call.1} parent=1 // pred_region
      %2076 = dma.done [#allocation7], 32
    $region45: #{tpu_custom_call.1} parent=1 // pred_fallthru
      _
    %2077 = vsyncpa [#allocation5], 1
    %2078 = vsyncpa [#allocation7], 1

</llo_original>
